<compile_context>
chip_gen: v6e
topology: v6e:2x2x1
jax: 0.10.0
libtpu: 0.0.40
codegen_flags: <defaults>
</compile_context>

<pallas_src>
import functools

import jax
import jax.numpy as jnp
from jax.experimental import pallas as pl
from jax.experimental.pallas import tpu as pltpu


# ---------------------------------------------------------------------------
# Hardware-aware helpers (defensive: safe defaults if the query fails).
# ---------------------------------------------------------------------------

def _vmem_budget_bytes():
    """~75% of physical VMEM: 48 MiB on v7x (64 MiB), 96 MiB on v5e/v6e (128)."""
    cap = 128 * 1024 * 1024
    try:
        cap = int(pltpu.get_tpu_info().vmem_capacity_bytes)
    except Exception:
        pass
    return (cap * 3) // 4


def _device_kind():
    try:
        return jax.devices()[0].device_kind.lower()
    except Exception:
        return ""


def _bf16_eup_ok():
    """bf16 VPU/EUP exists on v6e/v7x; v5e and older are f32-only."""
    kind = _device_kind()
    if not kind:
        return False
    for old in ("v2", "v3", "v4", "v5"):
        if old in kind:
            return False
    return True


def _derive_time_chunk(T, BB, H, gx_bytes, out_bytes, mxu_bytes, budget):
    """Largest TT whose pipelined working set fits the VMEM budget.

    working set ≈ 2*TT*BB*4H*gx_bytes   (gx double-buffer)
                + 2*TT*BB*H*out_bytes   (out double-buffer)
                + H*4H*mxu_bytes        (resident W_hh^T)
                + BB*H*(mxu_bytes + 4)  (h/c scratch)
    """
    G = 4 * H
    fixed = H * G * mxu_bytes + BB * H * (mxu_bytes + 4) + (2 << 20)  # +2MiB slack
    per_step = 2 * BB * (G * gx_bytes + H * out_bytes)
    tt = (budget - fixed) // max(per_step, 1)
    return int(max(1, min(tt, T, 128)))


# ---------------------------------------------------------------------------
# Kernel: serial recurrence (only h@W_hh^T per step lives in the loop).
# ---------------------------------------------------------------------------

def _lstm_recurrent_kernel(gx_ref, whh_hbm_ref, out_ref,
                           h_sc, c_sc, whh_sc, whh_sem,
                           *, hidden_dim, chunk, gate_dtype, unroll):
    """Recurrence over one chunk of `chunk` time steps for one batch block.

    gx_ref      : (TT, BB, 4H)  precomputed x@W_ih^T + b   (stream dtype)
    whh_hbm_ref : (H, 4H)       hidden->gates weights in HBM (pl.ANY)
    out_ref     : (TT, BB, H)   hidden outputs for this chunk
    h_sc        : (BB, H)       h state in MXU dtype (matmul LHS), persists
    c_sc        : (BB, H)       c state in f32, persists across time chunks
    whh_sc      : (H, 4H)       single-buffered resident copy of W_hh^T
    whh_sem     : DMA semaphore for the overlapped weight fetch
    """
    t_chunk = pl.program_id(1)          # time axis is grid axis 1 ("arbitrary")

    @pl.when(t_chunk == 0)
    def _init():
        # Overlapped weight fetch: issue the DMA, zero the state while it is
        # in flight, wait only just before first use.
        cp = pltpu.make_async_copy(whh_hbm_ref, whh_sc, whh_sem)
        cp.start()
        h_sc[...] = jnp.zeros_like(h_sc)
        c_sc[...] = jnp.zeros_like(c_sc)
        cp.wait()

    H = hidden_dim
    whh = whh_sc[...]                   # (H, 4H), resident, single-buffered

    # TODO(synk): for BB << MXU height, drive the MXU explicitly
    # (matmul_push_rhs once per chunk, matmul_acc_lhs/pop per step) to avoid
    # re-pushing W_hh into the systolic array every step.
    def step(i, carry):
        h_prev, c_prev = carry          # h in MXU dtype, c in f32
        gates = gx_ref[i].astype(jnp.float32) + jnp.dot(
            h_prev, whh, preferred_element_type=jnp.float32)
        # NOTE: for H a multiple of 128 these gate slices are lane-aligned;
        # TODO(synk): fold the gate axis for H < 128 to keep lane-dense slabs.
        g = gates.astype(gate_dtype)
        i_g = jax.nn.sigmoid(g[:, 0 * H:1 * H]).astype(jnp.float32)
        f_g = jax.nn.sigmoid(g[:, 1 * H:2 * H]).astype(jnp.float32)
        g_g = jnp.tanh(g[:, 2 * H:3 * H]).astype(jnp.float32)
        o_g = jax.nn.sigmoid(g[:, 3 * H:4 * H]).astype(jnp.float32)
        c_new = f_g * c_prev + i_g * g_g                      # f32 accumulation
        h_new = o_g * jnp.tanh(c_new.astype(gate_dtype)).astype(jnp.float32)
        out_ref[i] = h_new.astype(out_ref.dtype)
        return h_new.astype(h_sc.dtype), c_new

    h_fin, c_fin = jax.lax.fori_loop(
        0, chunk, step, (h_sc[...], c_sc[...]), unroll=unroll)
    h_sc[...] = h_fin
    c_sc[...] = c_fin


# ---------------------------------------------------------------------------
# One-layer wrapper: hoisted projection + pallas recurrence.
# ---------------------------------------------------------------------------

def lstm_single_layer(x_tbd, w_ih, w_hh, b_ih, b_hh, *,
                      mxu_dtype=jnp.bfloat16, out_dtype=jnp.float32,
                      time_chunk=None, batch_block=None):
    """Run one LSTM layer over the full sequence.

    x_tbd : (T, B, D) time-major input
    w_ih  : (4H, D) ; w_hh : (4H, H) ; b_ih, b_hh : (4H,)   (PyTorch layout)
    returns (T, B, H) time-major hidden states in `out_dtype`.
    """
    T, B, D = x_tbd.shape
    H = w_hh.shape[1]
    G = 4 * H

    mxu_dtype = jnp.dtype(mxu_dtype)
    out_dtype = jnp.dtype(out_dtype)
    stream_dtype = mxu_dtype                        # bf16 gx stream on fast path
    gate_dtype = (jnp.bfloat16
                  if (mxu_dtype == jnp.dtype(jnp.bfloat16) and _bf16_eup_ok())
                  else jnp.float32)

    # ---- hoisted input projection: one big (T*B, D) x (D, 4H) matmul ----
    bias = jnp.asarray(b_ih, jnp.float32) + jnp.asarray(b_hh, jnp.float32)
    gx = jnp.dot(
        x_tbd.reshape(T * B, D).astype(mxu_dtype),
        jnp.asarray(w_ih).T.astype(mxu_dtype),
        preferred_element_type=jnp.float32,
    ) + bias[None, :]
    gx = gx.astype(stream_dtype).reshape(T, B, G)   # (T, B, 4H)

    # ---- batch blocking (megacore sharding on v7x when batch_block=B//2) ----
    BB = B if batch_block is None else int(batch_block)
    assert B % BB == 0, "batch_block must divide the batch"
    if BB != B:
        assert BB % 8 == 0, "batch_block must be a multiple of 8 (sublane tiling)"
    n_b = B // BB

    gx_bytes = jnp.dtype(stream_dtype).itemsize
    out_bytes = out_dtype.itemsize
    mxu_bytes = mxu_dtype.itemsize

    budget = _vmem_budget_bytes()
    if time_chunk is None:
        TT = _derive_time_chunk(T, BB, H, gx_bytes, out_bytes, mxu_bytes, budget)
    else:
        TT = int(min(time_chunk, T))
    n_t = pl.cdiv(T, TT)
    T_pad = n_t * TT
    if T_pad != T:
        gx = jnp.pad(gx, ((0, T_pad - T), (0, 0), (0, 0)))

    whh_t = jnp.asarray(w_hh).T.astype(mxu_dtype)   # (H, 4H), resident

    kernel = functools.partial(
        _lstm_recurrent_kernel, hidden_dim=H, chunk=TT,
        gate_dtype=gate_dtype, unroll=min(8, TT))

    cost = pl.CostEstimate(
        flops=2 * T * B * H * G + 10 * T * B * H,
        transcendentals=5 * T * B * H,
        bytes_accessed=int(gx.size * gx_bytes
                           + whh_t.size * mxu_bytes
                           + T_pad * B * H * out_bytes),
    )

    out = pl.pallas_call(
        kernel,
        out_shape=jax.ShapeDtypeStruct((T_pad, B, H), out_dtype),
        grid_spec=pltpu.PrefetchScalarGridSpec(
            num_scalar_prefetch=0,
            grid=(n_b, n_t),
            in_specs=[
                # precomputed gate pre-activations, streamed chunk by chunk
                pl.BlockSpec((TT, BB, G), lambda b, t: (t, b, 0)),
                # resident weight: stays in HBM, DMA'd once into VMEM scratch
                pl.BlockSpec(memory_space=pl.ANY),
            ],
            out_specs=pl.BlockSpec((TT, BB, H), lambda b, t: (t, b, 0)),
            scratch_shapes=[
                pltpu.VMEM((BB, H), mxu_dtype),     # h state (MXU dtype)
                pltpu.VMEM((BB, H), jnp.float32),   # c state (f32)
                pltpu.VMEM((H, G), mxu_dtype),      # single-buffered W_hh^T
                pltpu.SemaphoreType.DMA,            # weight-fetch semaphore
            ],
        ),
        compiler_params=pltpu.CompilerParams(
            dimension_semantics=("parallel", "arbitrary"),  # batch ||, time serial
            vmem_limit_bytes=int(budget),
        ),
        cost_estimate=cost,
    )(gx, whh_t)
    return out[:T]


# ---------------------------------------------------------------------------
# Module wrapper (forward-only equivalent of LSTMLayer_bacth_version).
# ---------------------------------------------------------------------------

class LSTMLayerBatchVersionPallas:
    """JAX/Pallas equivalent of LSTMLayer_bacth_version (forward only)."""

    def __init__(self, input_dim, hidden_dim, n_layers, key, mxu_dtype=jnp.bfloat16):
        self.input_dim = input_dim
        self.hidden_dim = hidden_dim
        self.n_layers = n_layers
        self.mxu_dtype = mxu_dtype
        # PyTorch nn.LSTM default init: U(-1/sqrt(H), 1/sqrt(H)) for all params.
        bound = 1.0 / (hidden_dim ** 0.5)
        self.params = []
        for layer in range(n_layers):
            d_in = input_dim if layer == 0 else hidden_dim
            key, k1, k2, k3, k4 = jax.random.split(key, 5)
            w_ih = jax.random.uniform(k1, (4 * hidden_dim, d_in), jnp.float32, -bound, bound)
            w_hh = jax.random.uniform(k2, (4 * hidden_dim, hidden_dim), jnp.float32, -bound, bound)
            b_ih = jax.random.uniform(k3, (4 * hidden_dim,), jnp.float32, -bound, bound)
            b_hh = jax.random.uniform(k4, (4 * hidden_dim,), jnp.float32, -bound, bound)
            self.params.append((w_ih, w_hh, b_ih, b_hh))

    def __call__(self, x_btd, *, batch_block=None):
        # x_btd: (B, T, D) batch_first, like the PyTorch module.
        x = jnp.transpose(x_btd, (1, 0, 2)).astype(jnp.float32)       # (T, B, D)
        mxu = jnp.dtype(self.mxu_dtype)
        n = len(self.params)
        # TODO(synk): fuse the n_layers stack into a single pallas_call so the
        # (T,B,H) inter-layer activations stay in VMEM instead of HBM.
        for li, (w_ih, w_hh, b_ih, b_hh) in enumerate(self.params):
            last = (li == n - 1)
            # Inter-layer activations streamed in bf16 on the fast path (the
            # next layer casts its input to mxu_dtype anyway); final layer f32.
            out_dtype = jnp.float32 if (last or mxu == jnp.dtype(jnp.float32)) \
                else self.mxu_dtype
            x = lstm_single_layer(x, w_ih, w_hh, b_ih, b_hh,
                                  mxu_dtype=self.mxu_dtype,
                                  out_dtype=out_dtype,
                                  batch_block=batch_block)            # (T, B, H)
        return jnp.transpose(x, (1, 0, 2))                            # (B, T, H)


def _reference_lstm(x_btd, params, hidden_dim):
    """Pure-JAX reference (lax.scan) matching PyTorch nn.LSTM semantics."""
    x = jnp.transpose(x_btd, (1, 0, 2)).astype(jnp.float32)  # (T, B, D)
    B = x.shape[1]
    H = hidden_dim
    for (w_ih, w_hh, b_ih, b_hh) in params:
        def step(carry, x_t):
            h, c = carry
            gates = x_t @ w_ih.T + h @ w_hh.T + b_ih + b_hh
            i = jax.nn.sigmoid(gates[:, 0 * H:1 * H])
            f = jax.nn.sigmoid(gates[:, 1 * H:2 * H])
            g = jnp.tanh(gates[:, 2 * H:3 * H])
            o = jax.nn.sigmoid(gates[:, 3 * H:4 * H])
            c_new = f * c + i * g
            h_new = o * jnp.tanh(c_new)
            return (h_new, c_new), h_new

        init = (jnp.zeros((B, H), jnp.float32), jnp.zeros((B, H), jnp.float32))
        _, x = jax.lax.scan(step, init, x)
    return jnp.transpose(x, (1, 0, 2))


if __name__ == "__main__":
    key = jax.random.PRNGKey(0)
    k_param, k_x = jax.random.split(key)

    batch, seq, input_dim, hidden_dim, n_layers = 2, 8, 4, 32, 2

    model = LSTMLayerBatchVersionPallas(input_dim, hidden_dim, n_layers, k_param,
                                        mxu_dtype=jnp.float32)
    x = jax.random.normal(k_x, (batch, seq, input_dim), dtype=jnp.float32)

    ref = _reference_lstm(x, model.params, hidden_dim)

    # f32 MXU operands / f32 streams: near-exact check against the reference.
    out_f32 = jax.block_until_ready(model(x))
    assert out_f32.shape == (batch, seq, hidden_dim)
    assert jnp.allclose(out_f32, ref, atol=1e-5, rtol=1e-5), "Pallas LSTM (f32) mismatch"

    # Fast path: bf16 MXU operands, bf16 gx / inter-layer streams, f32 state.
    # Tolerance loosened for bf16 rounding of the matmul operands and streams.
    model.mxu_dtype = jnp.bfloat16
    out_bf16 = jax.block_until_ready(model(x))
    assert out_bf16.shape == (batch, seq, hidden_dim)
    assert jnp.allclose(out_bf16, ref, atol=1e-1, rtol=1e-1), "Pallas LSTM (bf16) mismatch"

    print("KERNEL_OK")
</pallas_src>

<mosaic_0001>
module attributes {stable_mosaic.version = 11 : i64} {
  func.func @_lstm_recurrent_kernel(%arg0: i32, %arg1: i32, %arg2: memref<8x2x128xf32, #tpu.memory_space<vmem>>, %arg3: memref<32x128xf32, #tpu.memory_space<any>>, %arg4: memref<8x2x32xf32, #tpu.memory_space<vmem>>, %arg5: memref<2x32xf32, #tpu.memory_space<vmem>>, %arg6: memref<2x32xf32, #tpu.memory_space<vmem>>, %arg7: memref<32x128xf32, #tpu.memory_space<vmem>>, %arg8: memref<!tpu.dma_semaphore, #tpu.memory_space<semaphore_mem>>) attributes {dimension_semantics = [#tpu.dimension_semantics<parallel>, #tpu.dimension_semantics<arbitrary>], iteration_bounds = array<i64: 1, 1>, scalar_prefetch = 0 : i64, scratch_operands = 4 : i64, tpu.core_type = #tpu.core_type<tc>, window_params = [{transform_indices = @transform_0, window_bounds = array<i64: 8, 2, 128>}, {}, {transform_indices = @transform_2, window_bounds = array<i64: 8, 2, 32>}]} {
    %c0_i32 = arith.constant 0 : i32
    %0 = arith.cmpi eq, %arg1, %c0_i32 : i32
    %1 = arith.extui %0 : i1 to i32
    %c0_i32_0 = arith.constant 0 : i32
    %2 = arith.cmpi ne, %1, %c0_i32_0 : i32
    scf.if %2 {
      tpu.enqueue_dma source(%arg3 : memref<32x128xf32, #tpu.memory_space<any>>) target(%arg7 : memref<32x128xf32, #tpu.memory_space<vmem>>) target_semaphore(%arg8 : memref<!tpu.dma_semaphore, #tpu.memory_space<semaphore_mem>>)
      %cst_74 = arith.constant 0.000000e+00 : f32
      %280 = vector.broadcast %cst_74 : f32 to vector<2x32xf32>
      %c0_75 = arith.constant 0 : index
      %c0_76 = arith.constant 0 : index
      %281 = vector.load %arg5[%c0_75, %c0_76] : memref<2x32xf32, #tpu.memory_space<vmem>>, vector<2x32xf32>
      tpu.vector_store %arg5[%c0_75, %c0_76], %280 {strides = array<i32>} : memref<2x32xf32, #tpu.memory_space<vmem>>, vector<2x32xf32>,
      %cst_77 = arith.constant 0.000000e+00 : f32
      %282 = vector.broadcast %cst_77 : f32 to vector<2x32xf32>
      %c0_78 = arith.constant 0 : index
      %c0_79 = arith.constant 0 : index
      %283 = vector.load %arg6[%c0_78, %c0_79] : memref<2x32xf32, #tpu.memory_space<vmem>>, vector<2x32xf32>
      tpu.vector_store %arg6[%c0_78, %c0_79], %282 {strides = array<i32>} : memref<2x32xf32, #tpu.memory_space<vmem>>, vector<2x32xf32>,
      tpu.wait_dma2 semaphore(%arg8 : memref<!tpu.dma_semaphore, #tpu.memory_space<semaphore_mem>>) src(%arg3 : memref<32x128xf32, #tpu.memory_space<any>>) dst(%arg7 : memref<32x128xf32, #tpu.memory_space<vmem>>)
    } else {
    }
    %c0 = arith.constant 0 : index
    %c0_1 = arith.constant 0 : index
    %3 = vector.load %arg7[%c0, %c0_1] : memref<32x128xf32, #tpu.memory_space<vmem>>, vector<32x128xf32>
    %c0_2 = arith.constant 0 : index
    %c0_3 = arith.constant 0 : index
    %4 = vector.load %arg5[%c0_2, %c0_3] : memref<2x32xf32, #tpu.memory_space<vmem>>, vector<2x32xf32>
    %c0_4 = arith.constant 0 : index
    %c0_5 = arith.constant 0 : index
    %5 = vector.load %arg6[%c0_4, %c0_5] : memref<2x32xf32, #tpu.memory_space<vmem>>, vector<2x32xf32>
    %c0_i32_6 = arith.constant 0 : i32
    %6 = arith.index_cast %c0_i32_6 : i32 to index
    %c0_7 = arith.constant 0 : index
    %c0_8 = arith.constant 0 : index
    %7 = vector.load %arg2[%6, %c0_7, %c0_8] : memref<8x2x128xf32, #tpu.memory_space<vmem>>, vector<1x2x128xf32>
    %8 = vector.shape_cast %7 : vector<1x2x128xf32> to vector<2x128xf32>
    %cst = arith.constant dense<0.000000e+00> : vector<2x128xf32>
    %9 = tpu.matmul %4, %3, %cst {dimension_numbers = #tpu.dot_dimension_numbers<[1], [0], [0], [1], [0, 0, 1, 1], [], []>} : vector<2x32xf32>, vector<32x128xf32>, vector<2x128xf32> -> vector<2x128xf32>
    %10 = arith.addf %8, %9 : vector<2x128xf32>
    %11 = vector.extract_strided_slice %10 {offsets = [0, 0], sizes = [2, 32], strides = [1, 1]} : vector<2x128xf32> to vector<2x32xf32>
    %12 = arith.negf %11 : vector<2x32xf32>
    %13 = math.exp %12 : vector<2x32xf32>
    %cst_9 = arith.constant 1.000000e+00 : f32
    %14 = vector.broadcast %cst_9 : f32 to vector<2x32xf32>
    %15 = arith.addf %14, %13 : vector<2x32xf32>
    %16 = arith.divf %14, %15 : vector<2x32xf32>
    %17 = vector.extract_strided_slice %10 {offsets = [0, 32], sizes = [2, 32], strides = [1, 1]} : vector<2x128xf32> to vector<2x32xf32>
    %18 = arith.negf %17 : vector<2x32xf32>
    %19 = math.exp %18 : vector<2x32xf32>
    %cst_10 = arith.constant 1.000000e+00 : f32
    %20 = vector.broadcast %cst_10 : f32 to vector<2x32xf32>
    %21 = arith.addf %20, %19 : vector<2x32xf32>
    %22 = arith.divf %20, %21 : vector<2x32xf32>
    %23 = vector.extract_strided_slice %10 {offsets = [0, 64], sizes = [2, 32], strides = [1, 1]} : vector<2x128xf32> to vector<2x32xf32>
    %24 = math.tanh %23 : vector<2x32xf32>
    %25 = vector.extract_strided_slice %10 {offsets = [0, 96], sizes = [2, 32], strides = [1, 1]} : vector<2x128xf32> to vector<2x32xf32>
    %26 = arith.negf %25 : vector<2x32xf32>
    %27 = math.exp %26 : vector<2x32xf32>
    %cst_11 = arith.constant 1.000000e+00 : f32
    %28 = vector.broadcast %cst_11 : f32 to vector<2x32xf32>
    %29 = arith.addf %28, %27 : vector<2x32xf32>
    %30 = arith.divf %28, %29 : vector<2x32xf32>
    %31 = arith.mulf %22, %5 : vector<2x32xf32>
    %32 = arith.mulf %16, %24 : vector<2x32xf32>
    %33 = arith.addf %31, %32 : vector<2x32xf32>
    %34 = math.tanh %33 : vector<2x32xf32>
    %35 = arith.mulf %30, %34 : vector<2x32xf32>
    %36 = arith.index_cast %c0_i32_6 : i32 to index
    %c0_12 = arith.constant 0 : index
    %c0_13 = arith.constant 0 : index
    %37 = vector.load %arg4[%36, %c0_12, %c0_13] : memref<8x2x32xf32, #tpu.memory_space<vmem>>, vector<1x2x32xf32>
    %38 = vector.shape_cast %37 : vector<1x2x32xf32> to vector<2x32xf32>
    %39 = vector.shape_cast %35 : vector<2x32xf32> to vector<1x2x32xf32>
    tpu.vector_store %arg4[%36, %c0_12, %c0_13], %39 {strides = array<i32>} : memref<8x2x32xf32, #tpu.memory_space<vmem>>, vector<1x2x32xf32>,
    %c1_i32 = arith.constant 1 : i32
    %40 = arith.index_cast %c1_i32 : i32 to index
    %c0_14 = arith.constant 0 : index
    %c0_15 = arith.constant 0 : index
    %41 = vector.load %arg2[%40, %c0_14, %c0_15] : memref<8x2x128xf32, #tpu.memory_space<vmem>>, vector<1x2x128xf32>
    %42 = vector.shape_cast %41 : vector<1x2x128xf32> to vector<2x128xf32>
    %cst_16 = arith.constant dense<0.000000e+00> : vector<2x128xf32>
    %43 = tpu.matmul %35, %3, %cst_16 {dimension_numbers = #tpu.dot_dimension_numbers<[1], [0], [0], [1], [0, 0, 1, 1], [], []>} : vector<2x32xf32>, vector<32x128xf32>, vector<2x128xf32> -> vector<2x128xf32>
    %44 = arith.addf %42, %43 : vector<2x128xf32>
    %45 = vector.extract_strided_slice %44 {offsets = [0, 0], sizes = [2, 32], strides = [1, 1]} : vector<2x128xf32> to vector<2x32xf32>
    %46 = arith.negf %45 : vector<2x32xf32>
    %47 = math.exp %46 : vector<2x32xf32>
    %cst_17 = arith.constant 1.000000e+00 : f32
    %48 = vector.broadcast %cst_17 : f32 to vector<2x32xf32>
    %49 = arith.addf %48, %47 : vector<2x32xf32>
    %50 = arith.divf %48, %49 : vector<2x32xf32>
    %51 = vector.extract_strided_slice %44 {offsets = [0, 32], sizes = [2, 32], strides = [1, 1]} : vector<2x128xf32> to vector<2x32xf32>
    %52 = arith.negf %51 : vector<2x32xf32>
    %53 = math.exp %52 : vector<2x32xf32>
    %cst_18 = arith.constant 1.000000e+00 : f32
    %54 = vector.broadcast %cst_18 : f32 to vector<2x32xf32>
    %55 = arith.addf %54, %53 : vector<2x32xf32>
    %56 = arith.divf %54, %55 : vector<2x32xf32>
    %57 = vector.extract_strided_slice %44 {offsets = [0, 64], sizes = [2, 32], strides = [1, 1]} : vector<2x128xf32> to vector<2x32xf32>
    %58 = math.tanh %57 : vector<2x32xf32>
    %59 = vector.extract_strided_slice %44 {offsets = [0, 96], sizes = [2, 32], strides = [1, 1]} : vector<2x128xf32> to vector<2x32xf32>
    %60 = arith.negf %59 : vector<2x32xf32>
    %61 = math.exp %60 : vector<2x32xf32>
    %cst_19 = arith.constant 1.000000e+00 : f32
    %62 = vector.broadcast %cst_19 : f32 to vector<2x32xf32>
    %63 = arith.addf %62, %61 : vector<2x32xf32>
    %64 = arith.divf %62, %63 : vector<2x32xf32>
    %65 = arith.mulf %56, %33 : vector<2x32xf32>
    %66 = arith.mulf %50, %58 : vector<2x32xf32>
    %67 = arith.addf %65, %66 : vector<2x32xf32>
    %68 = math.tanh %67 : vector<2x32xf32>
    %69 = arith.mulf %64, %68 : vector<2x32xf32>
    %70 = arith.index_cast %c1_i32 : i32 to index
    %c0_20 = arith.constant 0 : index
    %c0_21 = arith.constant 0 : index
    %71 = vector.load %arg4[%70, %c0_20, %c0_21] : memref<8x2x32xf32, #tpu.memory_space<vmem>>, vector<1x2x32xf32>
    %72 = vector.shape_cast %71 : vector<1x2x32xf32> to vector<2x32xf32>
    %73 = vector.shape_cast %69 : vector<2x32xf32> to vector<1x2x32xf32>
    tpu.vector_store %arg4[%70, %c0_20, %c0_21], %73 {strides = array<i32>} : memref<8x2x32xf32, #tpu.memory_space<vmem>>, vector<1x2x32xf32>,
    %c2_i32 = arith.constant 2 : i32
    %74 = arith.index_cast %c2_i32 : i32 to index
    %c0_22 = arith.constant 0 : index
    %c0_23 = arith.constant 0 : index
    %75 = vector.load %arg2[%74, %c0_22, %c0_23] : memref<8x2x128xf32, #tpu.memory_space<vmem>>, vector<1x2x128xf32>
    %76 = vector.shape_cast %75 : vector<1x2x128xf32> to vector<2x128xf32>
    %cst_24 = arith.constant dense<0.000000e+00> : vector<2x128xf32>
    %77 = tpu.matmul %69, %3, %cst_24 {dimension_numbers = #tpu.dot_dimension_numbers<[1], [0], [0], [1], [0, 0, 1, 1], [], []>} : vector<2x32xf32>, vector<32x128xf32>, vector<2x128xf32> -> vector<2x128xf32>
    %78 = arith.addf %76, %77 : vector<2x128xf32>
    %79 = vector.extract_strided_slice %78 {offsets = [0, 0], sizes = [2, 32], strides = [1, 1]} : vector<2x128xf32> to vector<2x32xf32>
    %80 = arith.negf %79 : vector<2x32xf32>
    %81 = math.exp %80 : vector<2x32xf32>
    %cst_25 = arith.constant 1.000000e+00 : f32
    %82 = vector.broadcast %cst_25 : f32 to vector<2x32xf32>
    %83 = arith.addf %82, %81 : vector<2x32xf32>
    %84 = arith.divf %82, %83 : vector<2x32xf32>
    %85 = vector.extract_strided_slice %78 {offsets = [0, 32], sizes = [2, 32], strides = [1, 1]} : vector<2x128xf32> to vector<2x32xf32>
    %86 = arith.negf %85 : vector<2x32xf32>
    %87 = math.exp %86 : vector<2x32xf32>
    %cst_26 = arith.constant 1.000000e+00 : f32
    %88 = vector.broadcast %cst_26 : f32 to vector<2x32xf32>
    %89 = arith.addf %88, %87 : vector<2x32xf32>
    %90 = arith.divf %88, %89 : vector<2x32xf32>
    %91 = vector.extract_strided_slice %78 {offsets = [0, 64], sizes = [2, 32], strides = [1, 1]} : vector<2x128xf32> to vector<2x32xf32>
    %92 = math.tanh %91 : vector<2x32xf32>
    %93 = vector.extract_strided_slice %78 {offsets = [0, 96], sizes = [2, 32], strides = [1, 1]} : vector<2x128xf32> to vector<2x32xf32>
    %94 = arith.negf %93 : vector<2x32xf32>
    %95 = math.exp %94 : vector<2x32xf32>
    %cst_27 = arith.constant 1.000000e+00 : f32
    %96 = vector.broadcast %cst_27 : f32 to vector<2x32xf32>
    %97 = arith.addf %96, %95 : vector<2x32xf32>
    %98 = arith.divf %96, %97 : vector<2x32xf32>
    %99 = arith.mulf %90, %67 : vector<2x32xf32>
    %100 = arith.mulf %84, %92 : vector<2x32xf32>
    %101 = arith.addf %99, %100 : vector<2x32xf32>
    %102 = math.tanh %101 : vector<2x32xf32>
    %103 = arith.mulf %98, %102 : vector<2x32xf32>
    %104 = arith.index_cast %c2_i32 : i32 to index
    %c0_28 = arith.constant 0 : index
    %c0_29 = arith.constant 0 : index
    %105 = vector.load %arg4[%104, %c0_28, %c0_29] : memref<8x2x32xf32, #tpu.memory_space<vmem>>, vector<1x2x32xf32>
    %106 = vector.shape_cast %105 : vector<1x2x32xf32> to vector<2x32xf32>
    %107 = vector.shape_cast %103 : vector<2x32xf32> to vector<1x2x32xf32>
    tpu.vector_store %arg4[%104, %c0_28, %c0_29], %107 {strides = array<i32>} : memref<8x2x32xf32, #tpu.memory_space<vmem>>, vector<1x2x32xf32>,
    %c3_i32 = arith.constant 3 : i32
    %108 = arith.index_cast %c3_i32 : i32 to index
    %c0_30 = arith.constant 0 : index
    %c0_31 = arith.constant 0 : index
    %109 = vector.load %arg2[%108, %c0_30, %c0_31] : memref<8x2x128xf32, #tpu.memory_space<vmem>>, vector<1x2x128xf32>
    %110 = vector.shape_cast %109 : vector<1x2x128xf32> to vector<2x128xf32>
    %cst_32 = arith.constant dense<0.000000e+00> : vector<2x128xf32>
    %111 = tpu.matmul %103, %3, %cst_32 {dimension_numbers = #tpu.dot_dimension_numbers<[1], [0], [0], [1], [0, 0, 1, 1], [], []>} : vector<2x32xf32>, vector<32x128xf32>, vector<2x128xf32> -> vector<2x128xf32>
    %112 = arith.addf %110, %111 : vector<2x128xf32>
    %113 = vector.extract_strided_slice %112 {offsets = [0, 0], sizes = [2, 32], strides = [1, 1]} : vector<2x128xf32> to vector<2x32xf32>
    %114 = arith.negf %113 : vector<2x32xf32>
    %115 = math.exp %114 : vector<2x32xf32>
    %cst_33 = arith.constant 1.000000e+00 : f32
    %116 = vector.broadcast %cst_33 : f32 to vector<2x32xf32>
    %117 = arith.addf %116, %115 : vector<2x32xf32>
    %118 = arith.divf %116, %117 : vector<2x32xf32>
    %119 = vector.extract_strided_slice %112 {offsets = [0, 32], sizes = [2, 32], strides = [1, 1]} : vector<2x128xf32> to vector<2x32xf32>
    %120 = arith.negf %119 : vector<2x32xf32>
    %121 = math.exp %120 : vector<2x32xf32>
    %cst_34 = arith.constant 1.000000e+00 : f32
    %122 = vector.broadcast %cst_34 : f32 to vector<2x32xf32>
    %123 = arith.addf %122, %121 : vector<2x32xf32>
    %124 = arith.divf %122, %123 : vector<2x32xf32>
    %125 = vector.extract_strided_slice %112 {offsets = [0, 64], sizes = [2, 32], strides = [1, 1]} : vector<2x128xf32> to vector<2x32xf32>
    %126 = math.tanh %125 : vector<2x32xf32>
    %127 = vector.extract_strided_slice %112 {offsets = [0, 96], sizes = [2, 32], strides = [1, 1]} : vector<2x128xf32> to vector<2x32xf32>
    %128 = arith.negf %127 : vector<2x32xf32>
    %129 = math.exp %128 : vector<2x32xf32>
    %cst_35 = arith.constant 1.000000e+00 : f32
    %130 = vector.broadcast %cst_35 : f32 to vector<2x32xf32>
    %131 = arith.addf %130, %129 : vector<2x32xf32>
    %132 = arith.divf %130, %131 : vector<2x32xf32>
    %133 = arith.mulf %124, %101 : vector<2x32xf32>
    %134 = arith.mulf %118, %126 : vector<2x32xf32>
    %135 = arith.addf %133, %134 : vector<2x32xf32>
    %136 = math.tanh %135 : vector<2x32xf32>
    %137 = arith.mulf %132, %136 : vector<2x32xf32>
    %138 = arith.index_cast %c3_i32 : i32 to index
    %c0_36 = arith.constant 0 : index
    %c0_37 = arith.constant 0 : index
    %139 = vector.load %arg4[%138, %c0_36, %c0_37] : memref<8x2x32xf32, #tpu.memory_space<vmem>>, vector<1x2x32xf32>
    %140 = vector.shape_cast %139 : vector<1x2x32xf32> to vector<2x32xf32>
    %141 = vector.shape_cast %137 : vector<2x32xf32> to vector<1x2x32xf32>
    tpu.vector_store %arg4[%138, %c0_36, %c0_37], %141 {strides = array<i32>} : memref<8x2x32xf32, #tpu.memory_space<vmem>>, vector<1x2x32xf32>,
    %c4_i32 = arith.constant 4 : i32
    %142 = arith.index_cast %c4_i32 : i32 to index
    %c0_38 = arith.constant 0 : index
    %c0_39 = arith.constant 0 : index
    %143 = vector.load %arg2[%142, %c0_38, %c0_39] : memref<8x2x128xf32, #tpu.memory_space<vmem>>, vector<1x2x128xf32>
    %144 = vector.shape_cast %143 : vector<1x2x128xf32> to vector<2x128xf32>
    %cst_40 = arith.constant dense<0.000000e+00> : vector<2x128xf32>
    %145 = tpu.matmul %137, %3, %cst_40 {dimension_numbers = #tpu.dot_dimension_numbers<[1], [0], [0], [1], [0, 0, 1, 1], [], []>} : vector<2x32xf32>, vector<32x128xf32>, vector<2x128xf32> -> vector<2x128xf32>
    %146 = arith.addf %144, %145 : vector<2x128xf32>
    %147 = vector.extract_strided_slice %146 {offsets = [0, 0], sizes = [2, 32], strides = [1, 1]} : vector<2x128xf32> to vector<2x32xf32>
    %148 = arith.negf %147 : vector<2x32xf32>
    %149 = math.exp %148 : vector<2x32xf32>
    %cst_41 = arith.constant 1.000000e+00 : f32
    %150 = vector.broadcast %cst_41 : f32 to vector<2x32xf32>
    %151 = arith.addf %150, %149 : vector<2x32xf32>
    %152 = arith.divf %150, %151 : vector<2x32xf32>
    %153 = vector.extract_strided_slice %146 {offsets = [0, 32], sizes = [2, 32], strides = [1, 1]} : vector<2x128xf32> to vector<2x32xf32>
    %154 = arith.negf %153 : vector<2x32xf32>
    %155 = math.exp %154 : vector<2x32xf32>
    %cst_42 = arith.constant 1.000000e+00 : f32
    %156 = vector.broadcast %cst_42 : f32 to vector<2x32xf32>
    %157 = arith.addf %156, %155 : vector<2x32xf32>
    %158 = arith.divf %156, %157 : vector<2x32xf32>
    %159 = vector.extract_strided_slice %146 {offsets = [0, 64], sizes = [2, 32], strides = [1, 1]} : vector<2x128xf32> to vector<2x32xf32>
    %160 = math.tanh %159 : vector<2x32xf32>
    %161 = vector.extract_strided_slice %146 {offsets = [0, 96], sizes = [2, 32], strides = [1, 1]} : vector<2x128xf32> to vector<2x32xf32>
    %162 = arith.negf %161 : vector<2x32xf32>
    %163 = math.exp %162 : vector<2x32xf32>
    %cst_43 = arith.constant 1.000000e+00 : f32
    %164 = vector.broadcast %cst_43 : f32 to vector<2x32xf32>
    %165 = arith.addf %164, %163 : vector<2x32xf32>
    %166 = arith.divf %164, %165 : vector<2x32xf32>
    %167 = arith.mulf %158, %135 : vector<2x32xf32>
    %168 = arith.mulf %152, %160 : vector<2x32xf32>
    %169 = arith.addf %167, %168 : vector<2x32xf32>
    %170 = math.tanh %169 : vector<2x32xf32>
    %171 = arith.mulf %166, %170 : vector<2x32xf32>
    %172 = arith.index_cast %c4_i32 : i32 to index
    %c0_44 = arith.constant 0 : index
    %c0_45 = arith.constant 0 : index
    %173 = vector.load %arg4[%172, %c0_44, %c0_45] : memref<8x2x32xf32, #tpu.memory_space<vmem>>, vector<1x2x32xf32>
    %174 = vector.shape_cast %173 : vector<1x2x32xf32> to vector<2x32xf32>
    %175 = vector.shape_cast %171 : vector<2x32xf32> to vector<1x2x32xf32>
    tpu.vector_store %arg4[%172, %c0_44, %c0_45], %175 {strides = array<i32>} : memref<8x2x32xf32, #tpu.memory_space<vmem>>, vector<1x2x32xf32>,
    %c5_i32 = arith.constant 5 : i32
    %176 = arith.index_cast %c5_i32 : i32 to index
    %c0_46 = arith.constant 0 : index
    %c0_47 = arith.constant 0 : index
    %177 = vector.load %arg2[%176, %c0_46, %c0_47] : memref<8x2x128xf32, #tpu.memory_space<vmem>>, vector<1x2x128xf32>
    %178 = vector.shape_cast %177 : vector<1x2x128xf32> to vector<2x128xf32>
    %cst_48 = arith.constant dense<0.000000e+00> : vector<2x128xf32>
    %179 = tpu.matmul %171, %3, %cst_48 {dimension_numbers = #tpu.dot_dimension_numbers<[1], [0], [0], [1], [0, 0, 1, 1], [], []>} : vector<2x32xf32>, vector<32x128xf32>, vector<2x128xf32> -> vector<2x128xf32>
    %180 = arith.addf %178, %179 : vector<2x128xf32>
    %181 = vector.extract_strided_slice %180 {offsets = [0, 0], sizes = [2, 32], strides = [1, 1]} : vector<2x128xf32> to vector<2x32xf32>
    %182 = arith.negf %181 : vector<2x32xf32>
    %183 = math.exp %182 : vector<2x32xf32>
    %cst_49 = arith.constant 1.000000e+00 : f32
    %184 = vector.broadcast %cst_49 : f32 to vector<2x32xf32>
    %185 = arith.addf %184, %183 : vector<2x32xf32>
    %186 = arith.divf %184, %185 : vector<2x32xf32>
    %187 = vector.extract_strided_slice %180 {offsets = [0, 32], sizes = [2, 32], strides = [1, 1]} : vector<2x128xf32> to vector<2x32xf32>
    %188 = arith.negf %187 : vector<2x32xf32>
    %189 = math.exp %188 : vector<2x32xf32>
    %cst_50 = arith.constant 1.000000e+00 : f32
    %190 = vector.broadcast %cst_50 : f32 to vector<2x32xf32>
    %191 = arith.addf %190, %189 : vector<2x32xf32>
    %192 = arith.divf %190, %191 : vector<2x32xf32>
    %193 = vector.extract_strided_slice %180 {offsets = [0, 64], sizes = [2, 32], strides = [1, 1]} : vector<2x128xf32> to vector<2x32xf32>
    %194 = math.tanh %193 : vector<2x32xf32>
    %195 = vector.extract_strided_slice %180 {offsets = [0, 96], sizes = [2, 32], strides = [1, 1]} : vector<2x128xf32> to vector<2x32xf32>
    %196 = arith.negf %195 : vector<2x32xf32>
    %197 = math.exp %196 : vector<2x32xf32>
    %cst_51 = arith.constant 1.000000e+00 : f32
    %198 = vector.broadcast %cst_51 : f32 to vector<2x32xf32>
    %199 = arith.addf %198, %197 : vector<2x32xf32>
    %200 = arith.divf %198, %199 : vector<2x32xf32>
    %201 = arith.mulf %192, %169 : vector<2x32xf32>
    %202 = arith.mulf %186, %194 : vector<2x32xf32>
    %203 = arith.addf %201, %202 : vector<2x32xf32>
    %204 = math.tanh %203 : vector<2x32xf32>
    %205 = arith.mulf %200, %204 : vector<2x32xf32>
    %206 = arith.index_cast %c5_i32 : i32 to index
    %c0_52 = arith.constant 0 : index
    %c0_53 = arith.constant 0 : index
    %207 = vector.load %arg4[%206, %c0_52, %c0_53] : memref<8x2x32xf32, #tpu.memory_space<vmem>>, vector<1x2x32xf32>
    %208 = vector.shape_cast %207 : vector<1x2x32xf32> to vector<2x32xf32>
    %209 = vector.shape_cast %205 : vector<2x32xf32> to vector<1x2x32xf32>
    tpu.vector_store %arg4[%206, %c0_52, %c0_53], %209 {strides = array<i32>} : memref<8x2x32xf32, #tpu.memory_space<vmem>>, vector<1x2x32xf32>,
    %c6_i32 = arith.constant 6 : i32
    %210 = arith.index_cast %c6_i32 : i32 to index
    %c0_54 = arith.constant 0 : index
    %c0_55 = arith.constant 0 : index
    %211 = vector.load %arg2[%210, %c0_54, %c0_55] : memref<8x2x128xf32, #tpu.memory_space<vmem>>, vector<1x2x128xf32>
    %212 = vector.shape_cast %211 : vector<1x2x128xf32> to vector<2x128xf32>
    %cst_56 = arith.constant dense<0.000000e+00> : vector<2x128xf32>
    %213 = tpu.matmul %205, %3, %cst_56 {dimension_numbers = #tpu.dot_dimension_numbers<[1], [0], [0], [1], [0, 0, 1, 1], [], []>} : vector<2x32xf32>, vector<32x128xf32>, vector<2x128xf32> -> vector<2x128xf32>
    %214 = arith.addf %212, %213 : vector<2x128xf32>
    %215 = vector.extract_strided_slice %214 {offsets = [0, 0], sizes = [2, 32], strides = [1, 1]} : vector<2x128xf32> to vector<2x32xf32>
    %216 = arith.negf %215 : vector<2x32xf32>
    %217 = math.exp %216 : vector<2x32xf32>
    %cst_57 = arith.constant 1.000000e+00 : f32
    %218 = vector.broadcast %cst_57 : f32 to vector<2x32xf32>
    %219 = arith.addf %218, %217 : vector<2x32xf32>
    %220 = arith.divf %218, %219 : vector<2x32xf32>
    %221 = vector.extract_strided_slice %214 {offsets = [0, 32], sizes = [2, 32], strides = [1, 1]} : vector<2x128xf32> to vector<2x32xf32>
    %222 = arith.negf %221 : vector<2x32xf32>
    %223 = math.exp %222 : vector<2x32xf32>
    %cst_58 = arith.constant 1.000000e+00 : f32
    %224 = vector.broadcast %cst_58 : f32 to vector<2x32xf32>
    %225 = arith.addf %224, %223 : vector<2x32xf32>
    %226 = arith.divf %224, %225 : vector<2x32xf32>
    %227 = vector.extract_strided_slice %214 {offsets = [0, 64], sizes = [2, 32], strides = [1, 1]} : vector<2x128xf32> to vector<2x32xf32>
    %228 = math.tanh %227 : vector<2x32xf32>
    %229 = vector.extract_strided_slice %214 {offsets = [0, 96], sizes = [2, 32], strides = [1, 1]} : vector<2x128xf32> to vector<2x32xf32>
    %230 = arith.negf %229 : vector<2x32xf32>
    %231 = math.exp %230 : vector<2x32xf32>
    %cst_59 = arith.constant 1.000000e+00 : f32
    %232 = vector.broadcast %cst_59 : f32 to vector<2x32xf32>
    %233 = arith.addf %232, %231 : vector<2x32xf32>
    %234 = arith.divf %232, %233 : vector<2x32xf32>
    %235 = arith.mulf %226, %203 : vector<2x32xf32>
    %236 = arith.mulf %220, %228 : vector<2x32xf32>
    %237 = arith.addf %235, %236 : vector<2x32xf32>
    %238 = math.tanh %237 : vector<2x32xf32>
    %239 = arith.mulf %234, %238 : vector<2x32xf32>
    %240 = arith.index_cast %c6_i32 : i32 to index
    %c0_60 = arith.constant 0 : index
    %c0_61 = arith.constant 0 : index
    %241 = vector.load %arg4[%240, %c0_60, %c0_61] : memref<8x2x32xf32, #tpu.memory_space<vmem>>, vector<1x2x32xf32>
    %242 = vector.shape_cast %241 : vector<1x2x32xf32> to vector<2x32xf32>
    %243 = vector.shape_cast %239 : vector<2x32xf32> to vector<1x2x32xf32>
    tpu.vector_store %arg4[%240, %c0_60, %c0_61], %243 {strides = array<i32>} : memref<8x2x32xf32, #tpu.memory_space<vmem>>, vector<1x2x32xf32>,
    %c7_i32 = arith.constant 7 : i32
    %244 = arith.index_cast %c7_i32 : i32 to index
    %c0_62 = arith.constant 0 : index
    %c0_63 = arith.constant 0 : index
    %245 = vector.load %arg2[%244, %c0_62, %c0_63] : memref<8x2x128xf32, #tpu.memory_space<vmem>>, vector<1x2x128xf32>
    %246 = vector.shape_cast %245 : vector<1x2x128xf32> to vector<2x128xf32>
    %cst_64 = arith.constant dense<0.000000e+00> : vector<2x128xf32>
    %247 = tpu.matmul %239, %3, %cst_64 {dimension_numbers = #tpu.dot_dimension_numbers<[1], [0], [0], [1], [0, 0, 1, 1], [], []>} : vector<2x32xf32>, vector<32x128xf32>, vector<2x128xf32> -> vector<2x128xf32>
    %248 = arith.addf %246, %247 : vector<2x128xf32>
    %249 = vector.extract_strided_slice %248 {offsets = [0, 0], sizes = [2, 32], strides = [1, 1]} : vector<2x128xf32> to vector<2x32xf32>
    %250 = arith.negf %249 : vector<2x32xf32>
    %251 = math.exp %250 : vector<2x32xf32>
    %cst_65 = arith.constant 1.000000e+00 : f32
    %252 = vector.broadcast %cst_65 : f32 to vector<2x32xf32>
    %253 = arith.addf %252, %251 : vector<2x32xf32>
    %254 = arith.divf %252, %253 : vector<2x32xf32>
    %255 = vector.extract_strided_slice %248 {offsets = [0, 32], sizes = [2, 32], strides = [1, 1]} : vector<2x128xf32> to vector<2x32xf32>
    %256 = arith.negf %255 : vector<2x32xf32>
    %257 = math.exp %256 : vector<2x32xf32>
    %cst_66 = arith.constant 1.000000e+00 : f32
    %258 = vector.broadcast %cst_66 : f32 to vector<2x32xf32>
    %259 = arith.addf %258, %257 : vector<2x32xf32>
    %260 = arith.divf %258, %259 : vector<2x32xf32>
    %261 = vector.extract_strided_slice %248 {offsets = [0, 64], sizes = [2, 32], strides = [1, 1]} : vector<2x128xf32> to vector<2x32xf32>
    %262 = math.tanh %261 : vector<2x32xf32>
    %263 = vector.extract_strided_slice %248 {offsets = [0, 96], sizes = [2, 32], strides = [1, 1]} : vector<2x128xf32> to vector<2x32xf32>
    %264 = arith.negf %263 : vector<2x32xf32>
    %265 = math.exp %264 : vector<2x32xf32>
    %cst_67 = arith.constant 1.000000e+00 : f32
    %266 = vector.broadcast %cst_67 : f32 to vector<2x32xf32>
    %267 = arith.addf %266, %265 : vector<2x32xf32>
    %268 = arith.divf %266, %267 : vector<2x32xf32>
    %269 = arith.mulf %260, %237 : vector<2x32xf32>
    %270 = arith.mulf %254, %262 : vector<2x32xf32>
    %271 = arith.addf %269, %270 : vector<2x32xf32>
    %272 = math.tanh %271 : vector<2x32xf32>
    %273 = arith.mulf %268, %272 : vector<2x32xf32>
    %274 = arith.index_cast %c7_i32 : i32 to index
    %c0_68 = arith.constant 0 : index
    %c0_69 = arith.constant 0 : index
    %275 = vector.load %arg4[%274, %c0_68, %c0_69] : memref<8x2x32xf32, #tpu.memory_space<vmem>>, vector<1x2x32xf32>
    %276 = vector.shape_cast %275 : vector<1x2x32xf32> to vector<2x32xf32>
    %277 = vector.shape_cast %273 : vector<2x32xf32> to vector<1x2x32xf32>
    tpu.vector_store %arg4[%274, %c0_68, %c0_69], %277 {strides = array<i32>} : memref<8x2x32xf32, #tpu.memory_space<vmem>>, vector<1x2x32xf32>,
    %c8_i32 = arith.constant 8 : i32
    %c0_70 = arith.constant 0 : index
    %c0_71 = arith.constant 0 : index
    %278 = vector.load %arg5[%c0_70, %c0_71] : memref<2x32xf32, #tpu.memory_space<vmem>>, vector<2x32xf32>
    tpu.vector_store %arg5[%c0_70, %c0_71], %273 {strides = array<i32>} : memref<2x32xf32, #tpu.memory_space<vmem>>, vector<2x32xf32>,
    %c0_72 = arith.constant 0 : index
    %c0_73 = arith.constant 0 : index
    %279 = vector.load %arg6[%c0_72, %c0_73] : memref<2x32xf32, #tpu.memory_space<vmem>>, vector<2x32xf32>
    tpu.vector_store %arg6[%c0_72, %c0_73], %271 {strides = array<i32>} : memref<2x32xf32, #tpu.memory_space<vmem>>, vector<2x32xf32>,
    return
  }
  func.func @transform_0(%arg0: i32, %arg1: i32) -> (i32, i32, i32) {
    %c0_i32 = arith.constant 0 : i32
    %c0_i32_0 = arith.constant 0 : i32
    return %arg1, %arg0, %c0_i32 : i32, i32, i32
  }
  func.func @transform_2(%arg0: i32, %arg1: i32) -> (i32, i32, i32) {
    %c0_i32 = arith.constant 0 : i32
    %c0_i32_0 = arith.constant 0 : i32
    return %arg1, %arg0, %c0_i32 : i32, i32, i32
  }
}

</mosaic_0001>

<llo_original>
// kernel: tpu_custom_call.1
$region0: #{tpu_custom_call.1}
  #allocation0 [shape = 'u32[]', space=smem, size = 0x4, offset = 0x4, fixed_abs, tag = 'smem constant byte address 0x4 - core index']
  #allocation1 [shape = 'u32[144,128]{1,0:T(1,128)}', space=vmem, size = 0x12000, scoped, tag = 'internal scratch']
  #allocation2 [shape = 'f32[2,32]{1,0:T(2,128)}', space=vmem, size = 0x400, scoped, tag = 'scratch operand']
  #allocation3 [shape = 'f32[2,32]{1,0:T(2,128)}', space=vmem, size = 0x400, scoped, tag = 'scratch operand']
  #allocation4 [shape = 'f32[32,128]{1,0:T(8,128)}', space=vmem, size = 0x4000, scoped, tag = 'scratch operand']
  #allocation5 [shape = 's32[1]{0}', space=sflag, size = 0x4, scoped, tag = 'scratch operand']
  #allocation10 [shape = 's32[]', space=sflag, size = 0x4, offset = 0, fixed_abs, tag = 'sflag constant byte address 0x0 - dummy sync flag']
  #allocation11 [shape = 's32[]', space=sflag, size = 0x4, offset = 0, fixed_abs, tag = 'sflag constant byte address 0x0 - dummy sync flag']
  #allocation12 [shape = 'u32[]', space=smem, size = 0x4, offset = 0x44, fixed_abs, tag = 'smem constant byte address 0x44 - assertion arg 0']
  #allocation13 [shape = 'u32[]', space=smem, size = 0x4, offset = 0x48, fixed_abs, tag = 'smem constant byte address 0x48 - assertion arg 1']
  %s0 = inlined_call_operand.hbm [shape: f32[8,2,128], index: 0, kind: input, shape index: {}]
  %s1 = inlined_call_operand.hbm [shape: f32[32,128], index: 1, kind: input, shape index: {}]
  %s2 = inlined_call_operand.hbm [shape: f32[8,2,32], index: 2, kind: output, shape index: {}]
  %s3 = sld [smem:[#allocation0]]
  $region26: #{tpu_custom_call.1} parent=0
    _
  %s5 = ssub.s32 1, %s3
  %s6 = scalar_select 0, %s5, %s3
  $region1: #{tpu_custom_call.1} parent=0
    #allocation6 [shape = 'u8[8192]{0}', space=vmem, size = 0x2000, scoped, tag = 'input window, operand 0, single buffered']
    #allocation7 [shape = 's32[1]{0}', space=sflag, size = 0x4, scoped, tag = 'scoped memory for tpu_custom_call.1']
    #allocation8 [shape = 's32[1]{0}', space=sflag, size = 0x4, scoped, tag = 'scoped memory for tpu_custom_call.1']
    #allocation9 [shape = 'u8[8192]{0}', space=vmem, size = 0x2000, scoped, tag = 'output window, operand 0, single buffered']
    %7 = vsyncpa [#allocation7], 0
    %8 = vsyncpa [#allocation8], 0
    // Predicated region
    $region2: #{tpu_custom_call.1} parent=1 // pred_check
      _
    $region3: #{tpu_custom_call.1} parent=1 // pred_check_branch
      %10 = sbr.rel (0) target = $region5
    $region4: #{tpu_custom_call.1} parent=1 // pred_region
      %s12 = ssub.s32 256, 256
      %13 = vsyncadd [#allocation7], %s12
      %s14 = sshll.u32 [#allocation6], 4
      %s15 = int_to_ptr.vmem [resolvable:$true] %s14
      %20 = dma.hbm_to_vmem [thread:$0]  %s0, 256, %s15, [#allocation7], 32, 32, 2
    $region5: #{tpu_custom_call.1} parent=1 // pred_fallthru
      _
    // Predicated region
    $region6: #{tpu_custom_call.1} parent=1 // pred_check
      _
    $region7: #{tpu_custom_call.1} parent=1 // pred_check_branch
      %22 = sbr.rel (0) target = $region9
    $region8: #{tpu_custom_call.1} parent=1 // pred_region
      %23 = dma.done [#allocation7], 256
    $region9: #{tpu_custom_call.1} parent=1 // pred_fallthru
      _
    %p24 = scmp.eq.s32.totalorder 0, 0
    // Predicated region
    $region10: #{tpu_custom_call.1} parent=1 // pred_check
      %p25 = pneg %p24
    $region11: #{tpu_custom_call.1} parent=1 // pred_check_branch
      %27 = sbr.rel (%p25) target = $region13
    $region12: #{tpu_custom_call.1} parent=1 // pred_region
      // Predicated region
      $region14: #{tpu_custom_call.1} parent=12 // pred_check
        _
      $region15: #{tpu_custom_call.1} parent=12 // pred_check_branch
        %29 = sbr.rel target = $region17
      $region16: #{tpu_custom_call.1} parent=12 // pred_region
        %30 = sst [smem:[#allocation12]] [#allocation11]
        %31 = sst [smem:[#allocation13]] [#allocation10]
      $region17: #{tpu_custom_call.1} parent=12 // pred_fallthru
        _
      %33 = shalt.err (0)
      %s35 = sshll.u32 [#allocation4], 4
      %s36 = int_to_ptr.vmem [resolvable:$true] %s35
      %38 = dma.hbm_to_vmem [thread:$0]  %s1, 512, %s36, [#allocation5]
      %vm39 = vcmask 254976
      %40 = vst.msk [vmem:[#allocation2] sm:$0x3] %vm39, 0.0
      %41 = vst.msk [vmem:[#allocation3] sm:$0x3] %vm39, 0.0
      %s42 = smul.u32 32, 1
      %s43 = sshll.u32 %s42, 4
      %44 = dma.done [#allocation5], %s43
    $region13: #{tpu_custom_call.1} parent=1 // pred_fallthru
      _
    %v45 = vld [vmem:[#allocation4] sm:$0xff]
    %v46 = vld [vmem:[#allocation4 + $0x8] sm:$0xff]
    %v47 = vld [vmem:[#allocation4 + $0x10] sm:$0xff]
    %v48 = vld [vmem:[#allocation4 + $0x18] sm:$0xff]
    %v49 = vld [vmem:[#allocation2] sm:$0x3]
    %v50 = vld [vmem:[#allocation3] sm:$0x3]
    %v51 = vld [vmem:[#allocation6] sm:$0x3]
    %vm52 = vcmask 261120
    %v54 = vsel %vm52, %v49, 0
    %56 = vmatprep.subr.mxu0 0.0
    %57 = vmatpush1.msra.mxu0 0.0
    %58 = vmatprep.subr.mxu0 0.0
    %59 = vmatpush1.msra.mxu0 0.0
    %60 = vmatprep.subr.mxu0 0.0
    %61 = vmatpush1.msra.mxu0 0.0
    %62 = vmatprep.subr.mxu0 0.0
    %63 = vmatpush1.msra.mxu0 0.0
    %64 = vmatprep.subr.mxu0 0.0
    %65 = vmatpush1.msra.mxu0 0.0
    %66 = vmatprep.subr.mxu0 0.0
    %67 = vmatpush1.msra.mxu0 0.0
    %68 = vmatprep.subr.mxu0 0.0
    %69 = vmatpush1.msra.mxu0 0.0
    %70 = vmatprep.subr.mxu0 0.0
    %71 = vmatpush1.msra.mxu0 0.0
    %72 = vmatprep.subr.mxu0 0.0
    %73 = vmatpush1.msra.mxu0 0.0
    %74 = vmatprep.subr.mxu0 0.0
    %75 = vmatpush1.msra.mxu0 0.0
    %76 = vmatprep.subr.mxu0 0.0
    %77 = vmatpush1.msra.mxu0 0.0
    %78 = vmatprep.subr.mxu0 0.0
    %79 = vmatpush1.msra.mxu0 0.0
    %80 = vmatprep.subr.mxu0 0.0
    %81 = vmatpush1.msra.mxu0 %v48
    %82 = vmatprep.subr.mxu0 0.0
    %83 = vmatpush1.msra.mxu0 %v47
    %84 = vmatprep.subr.mxu0 0.0
    %85 = vmatpush1.msra.mxu0 %v46
    %86 = vmatprep.subr.mxu0 0.0
    %87 = vmatpush1.msra.mxu0 %v45
    %88 = vmatprep.subr.mxu0 0.0
    %89 = vmatpush2.msra.mxu0 0.0
    %90 = vmatprep.subr.mxu0 0.0
    %91 = vmatpush2.msra.mxu0 0.0
    %92 = vmatprep.subr.mxu0 0.0
    %93 = vmatpush2.msra.mxu0 0.0
    %94 = vmatprep.subr.mxu0 0.0
    %95 = vmatpush2.msra.mxu0 0.0
    %96 = vmatprep.subr.mxu0 0.0
    %97 = vmatpush2.msra.mxu0 0.0
    %98 = vmatprep.subr.mxu0 0.0
    %99 = vmatpush2.msra.mxu0 0.0
    %100 = vmatprep.subr.mxu0 0.0
    %101 = vmatpush2.msra.mxu0 0.0
    %102 = vmatprep.subr.mxu0 0.0
    %103 = vmatpush2.msra.mxu0 0.0
    %104 = vmatprep.subr.mxu0 0.0
    %105 = vmatpush2.msra.mxu0 0.0
    %106 = vmatprep.subr.mxu0 0.0
    %107 = vmatpush2.msra.mxu0 0.0
    %108 = vmatprep.subr.mxu0 0.0
    %109 = vmatpush2.msra.mxu0 0.0
    %110 = vmatprep.subr.mxu0 0.0
    %111 = vmatpush2.msra.mxu0 0.0
    %112 = vmatprep.subr.mxu0 0.0
    %113 = vmatpush2.msra.mxu0 0.0
    %114 = vmatprep.subr.mxu0 0.0
    %115 = vmatpush2.msra.mxu0 0.0
    %116 = vmatprep.subr.mxu0 0.0
    %117 = vmatpush2.msra.mxu0 0.0
    %118 = vmatprep.subr.mxu0 0.0
    %119 = vmatpush2.msra.mxu0 0.0
    %120 = vmatprep.mubr.f32.mxu0 0.0
    %121 = vmatmul.mubr.f32.gmra.mxu0 %v54
    %v122 = vpop.f32.mrf.mxu0
    %v123 = vadd.f32 0.0, %v122
    %v124 = vpop.f32.mrf.mxu0
    %125 = vdwg.mxu0
    %v126 = vadd.f32 %v51, %v123
    %v127 = vxor.u32 %v126, 2147483648
    %v128 = vmul.f32 %v127, 1.442695
    %v129 = vpow.pop %v128
    %v130 = vadd.f32 %v129, 1.0
    %v131 = vrcp.pop %v130
    %v132 = vmul.f32 1.0, %v131
    %v133 = vtanh.pop %v126
    %135 = vrot.lane.b32.xlu0 %v50, 32
    %v136 = vpop.permute.xlu0 %135
    %v138 = vmul.f32 %v132, %v136
    %140 = vrot.lane.b32.xlu0 %v133, 64
    %v141 = vpop.permute.xlu0 %140
    %v143 = vmul.f32 %v132, %v141
    %145 = vrot.lane.b32.xlu0 %v143, 32
    %v146 = vpop.permute.xlu0 %145
    %v148 = vadd.f32 %v138, %v146
    %v149 = vtanh.pop %v148
    %151 = vrot.lane.b32.xlu0 %v149, 64
    %v152 = vpop.permute.xlu0 %151
    %v154 = vmul.f32 %v132, %v152
    %156 = vrot.lane.b32.xlu0 %v154, 32
    %v157 = vpop.permute.xlu0 %156
    %vm159 = vcmask 254976
    %160 = vst.msk [vmem:[#allocation9] sm:$0x3] %vm159, %v157
    %s161 = scalar_lea.vmem [#allocation6], 2
    %v162 = vld [vmem:[%s161] sm:$0x3]
    %v163 = vsel %vm52, %v157, 0
    %165 = vmatprep.subr.mxu0 0.0
    %166 = vmatpush1.msra.mxu0 0.0
    %167 = vmatprep.subr.mxu0 0.0
    %168 = vmatpush1.msra.mxu0 0.0
    %169 = vmatprep.subr.mxu0 0.0
    %170 = vmatpush1.msra.mxu0 0.0
    %171 = vmatprep.subr.mxu0 0.0
    %172 = vmatpush1.msra.mxu0 0.0
    %173 = vmatprep.subr.mxu0 0.0
    %174 = vmatpush1.msra.mxu0 0.0
    %175 = vmatprep.subr.mxu0 0.0
    %176 = vmatpush1.msra.mxu0 0.0
    %177 = vmatprep.subr.mxu0 0.0
    %178 = vmatpush1.msra.mxu0 0.0
    %179 = vmatprep.subr.mxu0 0.0
    %180 = vmatpush1.msra.mxu0 0.0
    %181 = vmatprep.subr.mxu0 0.0
    %182 = vmatpush1.msra.mxu0 0.0
    %183 = vmatprep.subr.mxu0 0.0
    %184 = vmatpush1.msra.mxu0 0.0
    %185 = vmatprep.subr.mxu0 0.0
    %186 = vmatpush1.msra.mxu0 0.0
    %187 = vmatprep.subr.mxu0 0.0
    %188 = vmatpush1.msra.mxu0 0.0
    %189 = vmatprep.subr.mxu0 0.0
    %190 = vmatpush1.msra.mxu0 %v48
    %191 = vmatprep.subr.mxu0 0.0
    %192 = vmatpush1.msra.mxu0 %v47
    %193 = vmatprep.subr.mxu0 0.0
    %194 = vmatpush1.msra.mxu0 %v46
    %195 = vmatprep.subr.mxu0 0.0
    %196 = vmatpush1.msra.mxu0 %v45
    %197 = vmatprep.subr.mxu0 0.0
    %198 = vmatpush2.msra.mxu0 0.0
    %199 = vmatprep.subr.mxu0 0.0
    %200 = vmatpush2.msra.mxu0 0.0
    %201 = vmatprep.subr.mxu0 0.0
    %202 = vmatpush2.msra.mxu0 0.0
    %203 = vmatprep.subr.mxu0 0.0
    %204 = vmatpush2.msra.mxu0 0.0
    %205 = vmatprep.subr.mxu0 0.0
    %206 = vmatpush2.msra.mxu0 0.0
    %207 = vmatprep.subr.mxu0 0.0
    %208 = vmatpush2.msra.mxu0 0.0
    %209 = vmatprep.subr.mxu0 0.0
    %210 = vmatpush2.msra.mxu0 0.0
    %211 = vmatprep.subr.mxu0 0.0
    %212 = vmatpush2.msra.mxu0 0.0
    %213 = vmatprep.subr.mxu0 0.0
    %214 = vmatpush2.msra.mxu0 0.0
    %215 = vmatprep.subr.mxu0 0.0
    %216 = vmatpush2.msra.mxu0 0.0
    %217 = vmatprep.subr.mxu0 0.0
    %218 = vmatpush2.msra.mxu0 0.0
    %219 = vmatprep.subr.mxu0 0.0
    %220 = vmatpush2.msra.mxu0 0.0
    %221 = vmatprep.subr.mxu0 0.0
    %222 = vmatpush2.msra.mxu0 0.0
    %223 = vmatprep.subr.mxu0 0.0
    %224 = vmatpush2.msra.mxu0 0.0
    %225 = vmatprep.subr.mxu0 0.0
    %226 = vmatpush2.msra.mxu0 0.0
    %227 = vmatprep.subr.mxu0 0.0
    %228 = vmatpush2.msra.mxu0 0.0
    %229 = vmatprep.mubr.f32.mxu0 0.0
    %230 = vmatmul.mubr.f32.gmra.mxu0 %v163
    %v231 = vpop.f32.mrf.mxu0
    %v232 = vadd.f32 0.0, %v231
    %v233 = vpop.f32.mrf.mxu0
    %234 = vdwg.mxu0
    %v235 = vadd.f32 %v162, %v232
    %v236 = vxor.u32 %v235, 2147483648
    %v237 = vmul.f32 %v236, 1.442695
    %v238 = vpow.pop %v237
    %v239 = vadd.f32 %v238, 1.0
    %v240 = vrcp.pop %v239
    %v241 = vmul.f32 1.0, %v240
    %v242 = vtanh.pop %v235
    %v243 = vmul.f32 %v241, %v148
    %245 = vrot.lane.b32.xlu0 %v242, 64
    %v246 = vpop.permute.xlu0 %245
    %v248 = vmul.f32 %v241, %v246
    %250 = vrot.lane.b32.xlu0 %v248, 32
    %v251 = vpop.permute.xlu0 %250
    %v253 = vadd.f32 %v243, %v251
    %v254 = vtanh.pop %v253
    %256 = vrot.lane.b32.xlu0 %v254, 64
    %v257 = vpop.permute.xlu0 %256
    %v259 = vmul.f32 %v241, %v257
    %261 = vrot.lane.b32.xlu0 %v259, 32
    %v262 = vpop.permute.xlu0 %261
    %s264 = scalar_lea.vmem [#allocation9], 2
    %265 = vst.msk [vmem:[%s264] sm:$0x3] %vm159, %v262
    %s266 = scalar_lea.vmem [#allocation6], 4
    %v267 = vld [vmem:[%s266] sm:$0x3]
    %v268 = vsel %vm52, %v262, 0
    %270 = vmatprep.subr.mxu0 0.0
    %271 = vmatpush1.msra.mxu0 0.0
    %272 = vmatprep.subr.mxu0 0.0
    %273 = vmatpush1.msra.mxu0 0.0
    %274 = vmatprep.subr.mxu0 0.0
    %275 = vmatpush1.msra.mxu0 0.0
    %276 = vmatprep.subr.mxu0 0.0
    %277 = vmatpush1.msra.mxu0 0.0
    %278 = vmatprep.subr.mxu0 0.0
    %279 = vmatpush1.msra.mxu0 0.0
    %280 = vmatprep.subr.mxu0 0.0
    %281 = vmatpush1.msra.mxu0 0.0
    %282 = vmatprep.subr.mxu0 0.0
    %283 = vmatpush1.msra.mxu0 0.0
    %284 = vmatprep.subr.mxu0 0.0
    %285 = vmatpush1.msra.mxu0 0.0
    %286 = vmatprep.subr.mxu0 0.0
    %287 = vmatpush1.msra.mxu0 0.0
    %288 = vmatprep.subr.mxu0 0.0
    %289 = vmatpush1.msra.mxu0 0.0
    %290 = vmatprep.subr.mxu0 0.0
    %291 = vmatpush1.msra.mxu0 0.0
    %292 = vmatprep.subr.mxu0 0.0
    %293 = vmatpush1.msra.mxu0 0.0
    %294 = vmatprep.subr.mxu0 0.0
    %295 = vmatpush1.msra.mxu0 %v48
    %296 = vmatprep.subr.mxu0 0.0
    %297 = vmatpush1.msra.mxu0 %v47
    %298 = vmatprep.subr.mxu0 0.0
    %299 = vmatpush1.msra.mxu0 %v46
    %300 = vmatprep.subr.mxu0 0.0
    %301 = vmatpush1.msra.mxu0 %v45
    %302 = vmatprep.subr.mxu0 0.0
    %303 = vmatpush2.msra.mxu0 0.0
    %304 = vmatprep.subr.mxu0 0.0
    %305 = vmatpush2.msra.mxu0 0.0
    %306 = vmatprep.subr.mxu0 0.0
    %307 = vmatpush2.msra.mxu0 0.0
    %308 = vmatprep.subr.mxu0 0.0
    %309 = vmatpush2.msra.mxu0 0.0
    %310 = vmatprep.subr.mxu0 0.0
    %311 = vmatpush2.msra.mxu0 0.0
    %312 = vmatprep.subr.mxu0 0.0
    %313 = vmatpush2.msra.mxu0 0.0
    %314 = vmatprep.subr.mxu0 0.0
    %315 = vmatpush2.msra.mxu0 0.0
    %316 = vmatprep.subr.mxu0 0.0
    %317 = vmatpush2.msra.mxu0 0.0
    %318 = vmatprep.subr.mxu0 0.0
    %319 = vmatpush2.msra.mxu0 0.0
    %320 = vmatprep.subr.mxu0 0.0
    %321 = vmatpush2.msra.mxu0 0.0
    %322 = vmatprep.subr.mxu0 0.0
    %323 = vmatpush2.msra.mxu0 0.0
    %324 = vmatprep.subr.mxu0 0.0
    %325 = vmatpush2.msra.mxu0 0.0
    %326 = vmatprep.subr.mxu0 0.0
    %327 = vmatpush2.msra.mxu0 0.0
    %328 = vmatprep.subr.mxu0 0.0
    %329 = vmatpush2.msra.mxu0 0.0
    %330 = vmatprep.subr.mxu0 0.0
    %331 = vmatpush2.msra.mxu0 0.0
    %332 = vmatprep.subr.mxu0 0.0
    %333 = vmatpush2.msra.mxu0 0.0
    %334 = vmatprep.mubr.f32.mxu0 0.0
    %335 = vmatmul.mubr.f32.gmra.mxu0 %v268
    %v336 = vpop.f32.mrf.mxu0
    %v337 = vadd.f32 0.0, %v336
    %v338 = vpop.f32.mrf.mxu0
    %339 = vdwg.mxu0
    %v340 = vadd.f32 %v267, %v337
    %v341 = vxor.u32 %v340, 2147483648
    %v342 = vmul.f32 %v341, 1.442695
    %v343 = vpow.pop %v342
    %v344 = vadd.f32 %v343, 1.0
    %v345 = vrcp.pop %v344
    %v346 = vmul.f32 1.0, %v345
    %v347 = vtanh.pop %v340
    %v348 = vmul.f32 %v346, %v253
    %350 = vrot.lane.b32.xlu0 %v347, 64
    %v351 = vpop.permute.xlu0 %350
    %v353 = vmul.f32 %v346, %v351
    %355 = vrot.lane.b32.xlu0 %v353, 32
    %v356 = vpop.permute.xlu0 %355
    %v358 = vadd.f32 %v348, %v356
    %v359 = vtanh.pop %v358
    %361 = vrot.lane.b32.xlu0 %v359, 64
    %v362 = vpop.permute.xlu0 %361
    %v364 = vmul.f32 %v346, %v362
    %366 = vrot.lane.b32.xlu0 %v364, 32
    %v367 = vpop.permute.xlu0 %366
    %s369 = scalar_lea.vmem [#allocation9], 4
    %370 = vst.msk [vmem:[%s369] sm:$0x3] %vm159, %v367
    %s371 = scalar_lea.vmem [#allocation6], 6
    %v372 = vld [vmem:[%s371] sm:$0x3]
    %v373 = vsel %vm52, %v367, 0
    %375 = vmatprep.subr.mxu0 0.0
    %376 = vmatpush1.msra.mxu0 0.0
    %377 = vmatprep.subr.mxu0 0.0
    %378 = vmatpush1.msra.mxu0 0.0
    %379 = vmatprep.subr.mxu0 0.0
    %380 = vmatpush1.msra.mxu0 0.0
    %381 = vmatprep.subr.mxu0 0.0
    %382 = vmatpush1.msra.mxu0 0.0
    %383 = vmatprep.subr.mxu0 0.0
    %384 = vmatpush1.msra.mxu0 0.0
    %385 = vmatprep.subr.mxu0 0.0
    %386 = vmatpush1.msra.mxu0 0.0
    %387 = vmatprep.subr.mxu0 0.0
    %388 = vmatpush1.msra.mxu0 0.0
    %389 = vmatprep.subr.mxu0 0.0
    %390 = vmatpush1.msra.mxu0 0.0
    %391 = vmatprep.subr.mxu0 0.0
    %392 = vmatpush1.msra.mxu0 0.0
    %393 = vmatprep.subr.mxu0 0.0
    %394 = vmatpush1.msra.mxu0 0.0
    %395 = vmatprep.subr.mxu0 0.0
    %396 = vmatpush1.msra.mxu0 0.0
    %397 = vmatprep.subr.mxu0 0.0
    %398 = vmatpush1.msra.mxu0 0.0
    %399 = vmatprep.subr.mxu0 0.0
    %400 = vmatpush1.msra.mxu0 %v48
    %401 = vmatprep.subr.mxu0 0.0
    %402 = vmatpush1.msra.mxu0 %v47
    %403 = vmatprep.subr.mxu0 0.0
    %404 = vmatpush1.msra.mxu0 %v46
    %405 = vmatprep.subr.mxu0 0.0
    %406 = vmatpush1.msra.mxu0 %v45
    %407 = vmatprep.subr.mxu0 0.0
    %408 = vmatpush2.msra.mxu0 0.0
    %409 = vmatprep.subr.mxu0 0.0
    %410 = vmatpush2.msra.mxu0 0.0
    %411 = vmatprep.subr.mxu0 0.0
    %412 = vmatpush2.msra.mxu0 0.0
    %413 = vmatprep.subr.mxu0 0.0
    %414 = vmatpush2.msra.mxu0 0.0
    %415 = vmatprep.subr.mxu0 0.0
    %416 = vmatpush2.msra.mxu0 0.0
    %417 = vmatprep.subr.mxu0 0.0
    %418 = vmatpush2.msra.mxu0 0.0
    %419 = vmatprep.subr.mxu0 0.0
    %420 = vmatpush2.msra.mxu0 0.0
    %421 = vmatprep.subr.mxu0 0.0
    %422 = vmatpush2.msra.mxu0 0.0
    %423 = vmatprep.subr.mxu0 0.0
    %424 = vmatpush2.msra.mxu0 0.0
    %425 = vmatprep.subr.mxu0 0.0
    %426 = vmatpush2.msra.mxu0 0.0
    %427 = vmatprep.subr.mxu0 0.0
    %428 = vmatpush2.msra.mxu0 0.0
    %429 = vmatprep.subr.mxu0 0.0
    %430 = vmatpush2.msra.mxu0 0.0
    %431 = vmatprep.subr.mxu0 0.0
    %432 = vmatpush2.msra.mxu0 0.0
    %433 = vmatprep.subr.mxu0 0.0
    %434 = vmatpush2.msra.mxu0 0.0
    %435 = vmatprep.subr.mxu0 0.0
    %436 = vmatpush2.msra.mxu0 0.0
    %437 = vmatprep.subr.mxu0 0.0
    %438 = vmatpush2.msra.mxu0 0.0
    %439 = vmatprep.mubr.f32.mxu0 0.0
    %440 = vmatmul.mubr.f32.gmra.mxu0 %v373
    %v441 = vpop.f32.mrf.mxu0
    %v442 = vadd.f32 0.0, %v441
    %v443 = vpop.f32.mrf.mxu0
    %444 = vdwg.mxu0
    %v445 = vadd.f32 %v372, %v442
    %v446 = vxor.u32 %v445, 2147483648
    %v447 = vmul.f32 %v446, 1.442695
    %v448 = vpow.pop %v447
    %v449 = vadd.f32 %v448, 1.0
    %v450 = vrcp.pop %v449
    %v451 = vmul.f32 1.0, %v450
    %v452 = vtanh.pop %v445
    %v453 = vmul.f32 %v451, %v358
    %455 = vrot.lane.b32.xlu0 %v452, 64
    %v456 = vpop.permute.xlu0 %455
    %v458 = vmul.f32 %v451, %v456
    %460 = vrot.lane.b32.xlu0 %v458, 32
    %v461 = vpop.permute.xlu0 %460
    %v463 = vadd.f32 %v453, %v461
    %v464 = vtanh.pop %v463
    %466 = vrot.lane.b32.xlu0 %v464, 64
    %v467 = vpop.permute.xlu0 %466
    %v469 = vmul.f32 %v451, %v467
    %471 = vrot.lane.b32.xlu0 %v469, 32
    %v472 = vpop.permute.xlu0 %471
    %s474 = scalar_lea.vmem [#allocation9], 6
    %475 = vst.msk [vmem:[%s474] sm:$0x3] %vm159, %v472
    %s476 = scalar_lea.vmem [#allocation6], 8
    %v477 = vld [vmem:[%s476] sm:$0x3]
    %v478 = vsel %vm52, %v472, 0
    %480 = vmatprep.subr.mxu0 0.0
    %481 = vmatpush1.msra.mxu0 0.0
    %482 = vmatprep.subr.mxu0 0.0
    %483 = vmatpush1.msra.mxu0 0.0
    %484 = vmatprep.subr.mxu0 0.0
    %485 = vmatpush1.msra.mxu0 0.0
    %486 = vmatprep.subr.mxu0 0.0
    %487 = vmatpush1.msra.mxu0 0.0
    %488 = vmatprep.subr.mxu0 0.0
    %489 = vmatpush1.msra.mxu0 0.0
    %490 = vmatprep.subr.mxu0 0.0
    %491 = vmatpush1.msra.mxu0 0.0
    %492 = vmatprep.subr.mxu0 0.0
    %493 = vmatpush1.msra.mxu0 0.0
    %494 = vmatprep.subr.mxu0 0.0
    %495 = vmatpush1.msra.mxu0 0.0
    %496 = vmatprep.subr.mxu0 0.0
    %497 = vmatpush1.msra.mxu0 0.0
    %498 = vmatprep.subr.mxu0 0.0
    %499 = vmatpush1.msra.mxu0 0.0
    %500 = vmatprep.subr.mxu0 0.0
    %501 = vmatpush1.msra.mxu0 0.0
    %502 = vmatprep.subr.mxu0 0.0
    %503 = vmatpush1.msra.mxu0 0.0
    %504 = vmatprep.subr.mxu0 0.0
    %505 = vmatpush1.msra.mxu0 %v48
    %506 = vmatprep.subr.mxu0 0.0
    %507 = vmatpush1.msra.mxu0 %v47
    %508 = vmatprep.subr.mxu0 0.0
    %509 = vmatpush1.msra.mxu0 %v46
    %510 = vmatprep.subr.mxu0 0.0
    %511 = vmatpush1.msra.mxu0 %v45
    %512 = vmatprep.subr.mxu0 0.0
    %513 = vmatpush2.msra.mxu0 0.0
    %514 = vmatprep.subr.mxu0 0.0
    %515 = vmatpush2.msra.mxu0 0.0
    %516 = vmatprep.subr.mxu0 0.0
    %517 = vmatpush2.msra.mxu0 0.0
    %518 = vmatprep.subr.mxu0 0.0
    %519 = vmatpush2.msra.mxu0 0.0
    %520 = vmatprep.subr.mxu0 0.0
    %521 = vmatpush2.msra.mxu0 0.0
    %522 = vmatprep.subr.mxu0 0.0
    %523 = vmatpush2.msra.mxu0 0.0
    %524 = vmatprep.subr.mxu0 0.0
    %525 = vmatpush2.msra.mxu0 0.0
    %526 = vmatprep.subr.mxu0 0.0
    %527 = vmatpush2.msra.mxu0 0.0
    %528 = vmatprep.subr.mxu0 0.0
    %529 = vmatpush2.msra.mxu0 0.0
    %530 = vmatprep.subr.mxu0 0.0
    %531 = vmatpush2.msra.mxu0 0.0
    %532 = vmatprep.subr.mxu0 0.0
    %533 = vmatpush2.msra.mxu0 0.0
    %534 = vmatprep.subr.mxu0 0.0
    %535 = vmatpush2.msra.mxu0 0.0
    %536 = vmatprep.subr.mxu0 0.0
    %537 = vmatpush2.msra.mxu0 0.0
    %538 = vmatprep.subr.mxu0 0.0
    %539 = vmatpush2.msra.mxu0 0.0
    %540 = vmatprep.subr.mxu0 0.0
    %541 = vmatpush2.msra.mxu0 0.0
    %542 = vmatprep.subr.mxu0 0.0
    %543 = vmatpush2.msra.mxu0 0.0
    %544 = vmatprep.mubr.f32.mxu0 0.0
    %545 = vmatmul.mubr.f32.gmra.mxu0 %v478
    %v546 = vpop.f32.mrf.mxu0
    %v547 = vadd.f32 0.0, %v546
    %v548 = vpop.f32.mrf.mxu0
    %549 = vdwg.mxu0
    %v550 = vadd.f32 %v477, %v547
    %v551 = vxor.u32 %v550, 2147483648
    %v552 = vmul.f32 %v551, 1.442695
    %v553 = vpow.pop %v552
    %v554 = vadd.f32 %v553, 1.0
    %v555 = vrcp.pop %v554
    %v556 = vmul.f32 1.0, %v555
    %v557 = vtanh.pop %v550
    %v558 = vmul.f32 %v556, %v463
    %560 = vrot.lane.b32.xlu0 %v557, 64
    %v561 = vpop.permute.xlu0 %560
    %v563 = vmul.f32 %v556, %v561
    %565 = vrot.lane.b32.xlu0 %v563, 32
    %v566 = vpop.permute.xlu0 %565
    %v568 = vadd.f32 %v558, %v566
    %v569 = vtanh.pop %v568
    %571 = vrot.lane.b32.xlu0 %v569, 64
    %v572 = vpop.permute.xlu0 %571
    %v574 = vmul.f32 %v556, %v572
    %576 = vrot.lane.b32.xlu0 %v574, 32
    %v577 = vpop.permute.xlu0 %576
    %s579 = scalar_lea.vmem [#allocation9], 8
    %580 = vst.msk [vmem:[%s579] sm:$0x3] %vm159, %v577
    %s581 = scalar_lea.vmem [#allocation6], 10
    %v582 = vld [vmem:[%s581] sm:$0x3]
    %v583 = vsel %vm52, %v577, 0
    %585 = vmatprep.subr.mxu0 0.0
    %586 = vmatpush1.msra.mxu0 0.0
    %587 = vmatprep.subr.mxu0 0.0
    %588 = vmatpush1.msra.mxu0 0.0
    %589 = vmatprep.subr.mxu0 0.0
    %590 = vmatpush1.msra.mxu0 0.0
    %591 = vmatprep.subr.mxu0 0.0
    %592 = vmatpush1.msra.mxu0 0.0
    %593 = vmatprep.subr.mxu0 0.0
    %594 = vmatpush1.msra.mxu0 0.0
    %595 = vmatprep.subr.mxu0 0.0
    %596 = vmatpush1.msra.mxu0 0.0
    %597 = vmatprep.subr.mxu0 0.0
    %598 = vmatpush1.msra.mxu0 0.0
    %599 = vmatprep.subr.mxu0 0.0
    %600 = vmatpush1.msra.mxu0 0.0
    %601 = vmatprep.subr.mxu0 0.0
    %602 = vmatpush1.msra.mxu0 0.0
    %603 = vmatprep.subr.mxu0 0.0
    %604 = vmatpush1.msra.mxu0 0.0
    %605 = vmatprep.subr.mxu0 0.0
    %606 = vmatpush1.msra.mxu0 0.0
    %607 = vmatprep.subr.mxu0 0.0
    %608 = vmatpush1.msra.mxu0 0.0
    %609 = vmatprep.subr.mxu0 0.0
    %610 = vmatpush1.msra.mxu0 %v48
    %611 = vmatprep.subr.mxu0 0.0
    %612 = vmatpush1.msra.mxu0 %v47
    %613 = vmatprep.subr.mxu0 0.0
    %614 = vmatpush1.msra.mxu0 %v46
    %615 = vmatprep.subr.mxu0 0.0
    %616 = vmatpush1.msra.mxu0 %v45
    %617 = vmatprep.subr.mxu0 0.0
    %618 = vmatpush2.msra.mxu0 0.0
    %619 = vmatprep.subr.mxu0 0.0
    %620 = vmatpush2.msra.mxu0 0.0
    %621 = vmatprep.subr.mxu0 0.0
    %622 = vmatpush2.msra.mxu0 0.0
    %623 = vmatprep.subr.mxu0 0.0
    %624 = vmatpush2.msra.mxu0 0.0
    %625 = vmatprep.subr.mxu0 0.0
    %626 = vmatpush2.msra.mxu0 0.0
    %627 = vmatprep.subr.mxu0 0.0
    %628 = vmatpush2.msra.mxu0 0.0
    %629 = vmatprep.subr.mxu0 0.0
    %630 = vmatpush2.msra.mxu0 0.0
    %631 = vmatprep.subr.mxu0 0.0
    %632 = vmatpush2.msra.mxu0 0.0
    %633 = vmatprep.subr.mxu0 0.0
    %634 = vmatpush2.msra.mxu0 0.0
    %635 = vmatprep.subr.mxu0 0.0
    %636 = vmatpush2.msra.mxu0 0.0
    %637 = vmatprep.subr.mxu0 0.0
    %638 = vmatpush2.msra.mxu0 0.0
    %639 = vmatprep.subr.mxu0 0.0
    %640 = vmatpush2.msra.mxu0 0.0
    %641 = vmatprep.subr.mxu0 0.0
    %642 = vmatpush2.msra.mxu0 0.0
    %643 = vmatprep.subr.mxu0 0.0
    %644 = vmatpush2.msra.mxu0 0.0
    %645 = vmatprep.subr.mxu0 0.0
    %646 = vmatpush2.msra.mxu0 0.0
    %647 = vmatprep.subr.mxu0 0.0
    %648 = vmatpush2.msra.mxu0 0.0
    %649 = vmatprep.mubr.f32.mxu0 0.0
    %650 = vmatmul.mubr.f32.gmra.mxu0 %v583
    %v651 = vpop.f32.mrf.mxu0
    %v652 = vadd.f32 0.0, %v651
    %v653 = vpop.f32.mrf.mxu0
    %654 = vdwg.mxu0
    %v655 = vadd.f32 %v582, %v652
    %v656 = vxor.u32 %v655, 2147483648
    %v657 = vmul.f32 %v656, 1.442695
    %v658 = vpow.pop %v657
    %v659 = vadd.f32 %v658, 1.0
    %v660 = vrcp.pop %v659
    %v661 = vmul.f32 1.0, %v660
    %v662 = vtanh.pop %v655
    %v663 = vmul.f32 %v661, %v568
    %665 = vrot.lane.b32.xlu0 %v662, 64
    %v666 = vpop.permute.xlu0 %665
    %v668 = vmul.f32 %v661, %v666
    %670 = vrot.lane.b32.xlu0 %v668, 32
    %v671 = vpop.permute.xlu0 %670
    %v673 = vadd.f32 %v663, %v671
    %v674 = vtanh.pop %v673
    %676 = vrot.lane.b32.xlu0 %v674, 64
    %v677 = vpop.permute.xlu0 %676
    %v679 = vmul.f32 %v661, %v677
    %681 = vrot.lane.b32.xlu0 %v679, 32
    %v682 = vpop.permute.xlu0 %681
    %s684 = scalar_lea.vmem [#allocation9], 10
    %685 = vst.msk [vmem:[%s684] sm:$0x3] %vm159, %v682
    %s686 = scalar_lea.vmem [#allocation6], 12
    %v687 = vld [vmem:[%s686] sm:$0x3]
    %v688 = vsel %vm52, %v682, 0
    %690 = vmatprep.subr.mxu0 0.0
    %691 = vmatpush1.msra.mxu0 0.0
    %692 = vmatprep.subr.mxu0 0.0
    %693 = vmatpush1.msra.mxu0 0.0
    %694 = vmatprep.subr.mxu0 0.0
    %695 = vmatpush1.msra.mxu0 0.0
    %696 = vmatprep.subr.mxu0 0.0
    %697 = vmatpush1.msra.mxu0 0.0
    %698 = vmatprep.subr.mxu0 0.0
    %699 = vmatpush1.msra.mxu0 0.0
    %700 = vmatprep.subr.mxu0 0.0
    %701 = vmatpush1.msra.mxu0 0.0
    %702 = vmatprep.subr.mxu0 0.0
    %703 = vmatpush1.msra.mxu0 0.0
    %704 = vmatprep.subr.mxu0 0.0
    %705 = vmatpush1.msra.mxu0 0.0
    %706 = vmatprep.subr.mxu0 0.0
    %707 = vmatpush1.msra.mxu0 0.0
    %708 = vmatprep.subr.mxu0 0.0
    %709 = vmatpush1.msra.mxu0 0.0
    %710 = vmatprep.subr.mxu0 0.0
    %711 = vmatpush1.msra.mxu0 0.0
    %712 = vmatprep.subr.mxu0 0.0
    %713 = vmatpush1.msra.mxu0 0.0
    %714 = vmatprep.subr.mxu0 0.0
    %715 = vmatpush1.msra.mxu0 %v48
    %716 = vmatprep.subr.mxu0 0.0
    %717 = vmatpush1.msra.mxu0 %v47
    %718 = vmatprep.subr.mxu0 0.0
    %719 = vmatpush1.msra.mxu0 %v46
    %720 = vmatprep.subr.mxu0 0.0
    %721 = vmatpush1.msra.mxu0 %v45
    %722 = vmatprep.subr.mxu0 0.0
    %723 = vmatpush2.msra.mxu0 0.0
    %724 = vmatprep.subr.mxu0 0.0
    %725 = vmatpush2.msra.mxu0 0.0
    %726 = vmatprep.subr.mxu0 0.0
    %727 = vmatpush2.msra.mxu0 0.0
    %728 = vmatprep.subr.mxu0 0.0
    %729 = vmatpush2.msra.mxu0 0.0
    %730 = vmatprep.subr.mxu0 0.0
    %731 = vmatpush2.msra.mxu0 0.0
    %732 = vmatprep.subr.mxu0 0.0
    %733 = vmatpush2.msra.mxu0 0.0
    %734 = vmatprep.subr.mxu0 0.0
    %735 = vmatpush2.msra.mxu0 0.0
    %736 = vmatprep.subr.mxu0 0.0
    %737 = vmatpush2.msra.mxu0 0.0
    %738 = vmatprep.subr.mxu0 0.0
    %739 = vmatpush2.msra.mxu0 0.0
    %740 = vmatprep.subr.mxu0 0.0
    %741 = vmatpush2.msra.mxu0 0.0
    %742 = vmatprep.subr.mxu0 0.0
    %743 = vmatpush2.msra.mxu0 0.0
    %744 = vmatprep.subr.mxu0 0.0
    %745 = vmatpush2.msra.mxu0 0.0
    %746 = vmatprep.subr.mxu0 0.0
    %747 = vmatpush2.msra.mxu0 0.0
    %748 = vmatprep.subr.mxu0 0.0
    %749 = vmatpush2.msra.mxu0 0.0
    %750 = vmatprep.subr.mxu0 0.0
    %751 = vmatpush2.msra.mxu0 0.0
    %752 = vmatprep.subr.mxu0 0.0
    %753 = vmatpush2.msra.mxu0 0.0
    %754 = vmatprep.mubr.f32.mxu0 0.0
    %755 = vmatmul.mubr.f32.gmra.mxu0 %v688
    %v756 = vpop.f32.mrf.mxu0
    %v757 = vadd.f32 0.0, %v756
    %v758 = vpop.f32.mrf.mxu0
    %759 = vdwg.mxu0
    %v760 = vadd.f32 %v687, %v757
    %v761 = vxor.u32 %v760, 2147483648
    %v762 = vmul.f32 %v761, 1.442695
    %v763 = vpow.pop %v762
    %v764 = vadd.f32 %v763, 1.0
    %v765 = vrcp.pop %v764
    %v766 = vmul.f32 1.0, %v765
    %v767 = vtanh.pop %v760
    %v768 = vmul.f32 %v766, %v673
    %770 = vrot.lane.b32.xlu0 %v767, 64
    %v771 = vpop.permute.xlu0 %770
    %v773 = vmul.f32 %v766, %v771
    %775 = vrot.lane.b32.xlu0 %v773, 32
    %v776 = vpop.permute.xlu0 %775
    %v778 = vadd.f32 %v768, %v776
    %v779 = vtanh.pop %v778
    %781 = vrot.lane.b32.xlu0 %v779, 64
    %v782 = vpop.permute.xlu0 %781
    %v784 = vmul.f32 %v766, %v782
    %786 = vrot.lane.b32.xlu0 %v784, 32
    %v787 = vpop.permute.xlu0 %786
    %s789 = scalar_lea.vmem [#allocation9], 12
    %790 = vst.msk [vmem:[%s789] sm:$0x3] %vm159, %v787
    %s791 = scalar_lea.vmem [#allocation6], 14
    %v792 = vld [vmem:[%s791] sm:$0x3]
    %v793 = vsel %vm52, %v787, 0
    %795 = vmatprep.subr.mxu0 0.0
    %796 = vmatpush1.msra.mxu0 0.0
    %797 = vmatprep.subr.mxu0 0.0
    %798 = vmatpush1.msra.mxu0 0.0
    %799 = vmatprep.subr.mxu0 0.0
    %800 = vmatpush1.msra.mxu0 0.0
    %801 = vmatprep.subr.mxu0 0.0
    %802 = vmatpush1.msra.mxu0 0.0
    %803 = vmatprep.subr.mxu0 0.0
    %804 = vmatpush1.msra.mxu0 0.0
    %805 = vmatprep.subr.mxu0 0.0
    %806 = vmatpush1.msra.mxu0 0.0
    %807 = vmatprep.subr.mxu0 0.0
    %808 = vmatpush1.msra.mxu0 0.0
    %809 = vmatprep.subr.mxu0 0.0
    %810 = vmatpush1.msra.mxu0 0.0
    %811 = vmatprep.subr.mxu0 0.0
    %812 = vmatpush1.msra.mxu0 0.0
    %813 = vmatprep.subr.mxu0 0.0
    %814 = vmatpush1.msra.mxu0 0.0
    %815 = vmatprep.subr.mxu0 0.0
    %816 = vmatpush1.msra.mxu0 0.0
    %817 = vmatprep.subr.mxu0 0.0
    %818 = vmatpush1.msra.mxu0 0.0
    %819 = vmatprep.subr.mxu0 0.0
    %820 = vmatpush1.msra.mxu0 %v48
    %821 = vmatprep.subr.mxu0 0.0
    %822 = vmatpush1.msra.mxu0 %v47
    %823 = vmatprep.subr.mxu0 0.0
    %824 = vmatpush1.msra.mxu0 %v46
    %825 = vmatprep.subr.mxu0 0.0
    %826 = vmatpush1.msra.mxu0 %v45
    %827 = vmatprep.subr.mxu0 0.0
    %828 = vmatpush2.msra.mxu0 0.0
    %829 = vmatprep.subr.mxu0 0.0
    %830 = vmatpush2.msra.mxu0 0.0
    %831 = vmatprep.subr.mxu0 0.0
    %832 = vmatpush2.msra.mxu0 0.0
    %833 = vmatprep.subr.mxu0 0.0
    %834 = vmatpush2.msra.mxu0 0.0
    %835 = vmatprep.subr.mxu0 0.0
    %836 = vmatpush2.msra.mxu0 0.0
    %837 = vmatprep.subr.mxu0 0.0
    %838 = vmatpush2.msra.mxu0 0.0
    %839 = vmatprep.subr.mxu0 0.0
    %840 = vmatpush2.msra.mxu0 0.0
    %841 = vmatprep.subr.mxu0 0.0
    %842 = vmatpush2.msra.mxu0 0.0
    %843 = vmatprep.subr.mxu0 0.0
    %844 = vmatpush2.msra.mxu0 0.0
    %845 = vmatprep.subr.mxu0 0.0
    %846 = vmatpush2.msra.mxu0 0.0
    %847 = vmatprep.subr.mxu0 0.0
    %848 = vmatpush2.msra.mxu0 0.0
    %849 = vmatprep.subr.mxu0 0.0
    %850 = vmatpush2.msra.mxu0 0.0
    %851 = vmatprep.subr.mxu0 0.0
    %852 = vmatpush2.msra.mxu0 0.0
    %853 = vmatprep.subr.mxu0 0.0
    %854 = vmatpush2.msra.mxu0 0.0
    %855 = vmatprep.subr.mxu0 0.0
    %856 = vmatpush2.msra.mxu0 0.0
    %857 = vmatprep.subr.mxu0 0.0
    %858 = vmatpush2.msra.mxu0 0.0
    %859 = vmatprep.mubr.f32.mxu0 0.0
    %860 = vmatmul.mubr.f32.gmra.mxu0 %v793
    %v861 = vpop.f32.mrf.mxu0
    %v862 = vadd.f32 0.0, %v861
    %v863 = vpop.f32.mrf.mxu0
    %864 = vdwg.mxu0
    %v865 = vadd.f32 %v792, %v862
    %v866 = vxor.u32 %v865, 2147483648
    %v867 = vmul.f32 %v866, 1.442695
    %v868 = vpow.pop %v867
    %v869 = vadd.f32 %v868, 1.0
    %v870 = vrcp.pop %v869
    %v871 = vmul.f32 1.0, %v870
    %v872 = vtanh.pop %v865
    %v873 = vmul.f32 %v871, %v778
    %875 = vrot.lane.b32.xlu0 %v872, 64
    %v876 = vpop.permute.xlu0 %875
    %v878 = vmul.f32 %v871, %v876
    %880 = vrot.lane.b32.xlu0 %v878, 32
    %v881 = vpop.permute.xlu0 %880
    %v883 = vadd.f32 %v873, %v881
    %v884 = vtanh.pop %v883
    %886 = vrot.lane.b32.xlu0 %v884, 64
    %v887 = vpop.permute.xlu0 %886
    %v889 = vmul.f32 %v871, %v887
    %891 = vrot.lane.b32.xlu0 %v889, 32
    %v892 = vpop.permute.xlu0 %891
    %s894 = scalar_lea.vmem [#allocation9], 14
    %895 = vst.msk [vmem:[%s894] sm:$0x3] %vm159, %v892
    %896 = vst.msk [vmem:[#allocation2] sm:$0x3] %vm159, %v892
    %898 = vrot.lane.b32.xlu0 %v883, 96
    %v899 = vpop.permute.xlu0 %898
    %901 = vst.msk [vmem:[#allocation3] sm:$0x3] %vm159, %v899
    // Predicated region
    $region18: #{tpu_custom_call.1} parent=1 // pred_check
      _
    $region19: #{tpu_custom_call.1} parent=1 // pred_check_branch
      %903 = sbr.rel (0) target = $region21
    $region20: #{tpu_custom_call.1} parent=1 // pred_region
      %s905 = ssub.s32 256, 256
      %906 = vsyncadd [#allocation8], %s905
      %s907 = sshll.u32 [#allocation9], 4
      %s908 = int_to_ptr.vmem [resolvable:$true] %s907
      %913 = dma.vmem_to_hbm [thread:$0]  %s908, 256, %s2, [#allocation8], 32, 32, 2
    $region21: #{tpu_custom_call.1} parent=1 // pred_fallthru
      _
    // Predicated region
    $region22: #{tpu_custom_call.1} parent=1 // pred_check
      _
    $region23: #{tpu_custom_call.1} parent=1 // pred_check_branch
      %915 = sbr.rel (0) target = $region25
    $region24: #{tpu_custom_call.1} parent=1 // pred_region
      %916 = dma.done [#allocation8], 256
    $region25: #{tpu_custom_call.1} parent=1 // pred_fallthru
      _
    %917 = vsyncpa [#allocation7], 1
    %918 = vsyncpa [#allocation8], 1
  %919 = vsyncmov [#allocation5]
  %s920 = vpop.sfrf %919
  %p921 = scmp.eq.s32.totalorder %s920, 0
  %p922 = pneg %p921
  %924 = shalt.err (%p922)

</llo_original>
